<compile_context>
chip_gen: v5e
topology: v5e:2x2
jax: 0.10.0
libtpu: 0.0.40
codegen_flags: <defaults>
</compile_context>

<pallas_src>
import math
import jax
import jax.numpy as jnp
from jax.experimental import pallas as pl
from jax.experimental.pallas import tpu as pltpu

# ----------------------------- config (small) -------------------------------
B = 2                    # batch
S = 8                    # sequence length (layout elements)
EMB = 128                # LayoutEmbedding per-table width
D_MODEL = 32
N_HEADS = 4
HEAD_DIM = D_MODEL // N_HEADS
DIM_FF = 64
N_LAYERS = 2
NUM_LABELS = 10
LABEL_VOCAB = NUM_LABELS + 3
GRID = 32                # max(discrete_x_grid, discrete_y_grid)
EPS = 1e-5               # PyTorch LayerNorm default
NEG_INF = -1e30          # f32-safe additive key-padding mask (NOT bf16-safe;
                         # switch to jnp.where masking before any bf16 cast)


def _layer_norm(x, w, b):
    mu = jnp.mean(x, axis=-1, keepdims=True)
    var = jnp.mean((x - mu) ** 2, axis=-1, keepdims=True)
    return (x - mu) * jax.lax.rsqrt(var + EPS) * w + b


# ------------------------- fully fused encoder kernel ------------------------
def fused_encoder_kernel(x_ref, mask_ref, maskc_ref,
                         wqkv_ref, bqkv_ref, wo_ref, bo_ref,
                         w1_ref, b1_ref, w2_ref, b2_ref,
                         n1w_ref, n1b_ref, n2w_ref, n2b_ref,
                         fnw_ref, fnb_ref,
                         o_ref):
    # x:     (B, S, D_MODEL)  already-projected src (proj_cat folded in wrapper)
    # mask:  (B, S) f32, 1.0 = valid;  maskc: (B, S, 1) same mask, column layout
    x = x_ref[...].astype(jnp.float32).reshape(B * S, D_MODEL)

    mask = mask_ref[...].astype(jnp.float32)                 # (B, S)
    key_bias = ((1.0 - mask) * NEG_INF)[:, None, :]          # (B, 1, S)
    # head-batched additive bias, batch index z = h*B + b
    key_bias_hb = jnp.concatenate([key_bias] * N_HEADS, axis=0)   # (H*B, 1, S)
    scale = 1.0 / math.sqrt(HEAD_DIM)

    for l in range(N_LAYERS):                                # static unroll
        # ---- multi-head self attention (fused QKV, all heads batched) ----
        qkv = jnp.dot(x, wqkv_ref[l], preferred_element_type=jnp.float32) + bqkv_ref[l]
        q = qkv[:, 0 * D_MODEL:1 * D_MODEL].reshape(B, S, D_MODEL)
        k = qkv[:, 1 * D_MODEL:2 * D_MODEL].reshape(B, S, D_MODEL)
        v = qkv[:, 2 * D_MODEL:3 * D_MODEL].reshape(B, S, D_MODEL)

        # merge heads into the leading batch dim: (H*B, S, HEAD_DIM)
        qh = jnp.concatenate(
            [q[:, :, h * HEAD_DIM:(h + 1) * HEAD_DIM] for h in range(N_HEADS)], axis=0)
        kh = jnp.concatenate(
            [k[:, :, h * HEAD_DIM:(h + 1) * HEAD_DIM] for h in range(N_HEADS)], axis=0)
        vh = jnp.concatenate(
            [v[:, :, h * HEAD_DIM:(h + 1) * HEAD_DIM] for h in range(N_HEADS)], axis=0)

        s = jnp.einsum('zqd,zkd->zqk', qh * scale, kh,
                       preferred_element_type=jnp.float32)        # (H*B, S, S)
        s = s + key_bias_hb                                       # mask padded keys
        s = s - jnp.max(s, axis=-1, keepdims=True)
        e = jnp.exp(s)
        p = e * pl.reciprocal(jnp.sum(e, axis=-1, keepdims=True), approx=True)
        oh = jnp.einsum('zqk,zkd->zqd', p, vh,
                        preferred_element_type=jnp.float32)       # (H*B, S, HD)

        # heads back into lanes -> one Wo matmul for all heads
        o_cat = jnp.concatenate(
            [oh[h * B:(h + 1) * B] for h in range(N_HEADS)], axis=-1)   # (B, S, D)
        attn = jnp.dot(o_cat.reshape(B * S, D_MODEL), wo_ref[l],
                       preferred_element_type=jnp.float32) + bo_ref[l]

        x = _layer_norm(x + attn, n1w_ref[l], n1b_ref[l])

        # ---- feed-forward ----
        h1 = jnp.maximum(
            jnp.dot(x, w1_ref[l], preferred_element_type=jnp.float32) + b1_ref[l], 0.0)
        ff = jnp.dot(h1, w2_ref[l], preferred_element_type=jnp.float32) + b2_ref[l]
        x = _layer_norm(x + ff, n2w_ref[l], n2b_ref[l])

    # ---- final LayerNorm + masked mean pooling over the sequence ----
    x3 = _layer_norm(x, fnw_ref[...], fnb_ref[...]).reshape(B, S, D_MODEL)
    num = jnp.sum(x3 * maskc_ref[...], axis=1)                        # (B, D)
    den = jnp.maximum(jnp.sum(mask, axis=1, keepdims=True), 1.0)      # (B, 1), NaN guard
    o_ref[...] = (num / den).astype(o_ref.dtype)                      # exact divide, (B, D)


def _full_spec(a):
    nd = a.ndim
    return pl.BlockSpec(a.shape, lambda i, _nd=nd: (0,) * _nd)


def encoder_forward(params, labels, bboxes, masks):
    """labels: (B,S) int32 in [0, NUM_LABELS+3); bboxes: (B,S,4) int32 in [0, GRID);
    masks: (B,S) {0,1}, 1 = valid.  Returns pooled memory of shape (1, B, D_MODEL)."""
    # ---- proj_cat folded into the embedding tables (wrapper glue, plain JAX) ----
    # src = proj_cat([label_vec | box_vec0..3]) == sum of per-table projected gathers.
    lab_tab = jnp.dot(params["label_embed"], params["proj_w"][0:EMB])          # (vocab, D)
    x = lab_tab[labels]                                                        # (B, S, D)
    for i in range(4):
        box_tab = jnp.dot(params["bbox_embed"],
                          params["proj_w"][EMB * (1 + i):EMB * (2 + i)])       # (grid, D)
        x = x + box_tab[bboxes[..., i]]
    x = (x + params["proj_b"]).astype(jnp.float32)                             # (B, S, D)

    mask_f = masks.astype(jnp.float32)                                         # (B, S)
    mask_c = mask_f[:, :, None]                                                # (B, S, 1)

    flat = [
        x, mask_f, mask_c,
        params["wqkv"], params["bqkv"], params["wo"], params["bo"],
        params["w1"], params["b1"], params["w2"], params["b2"],
        params["n1w"], params["n1b"], params["n2w"], params["n2b"],
        params["fn_w"], params["fn_b"],
    ]
    # TODO(synk): if B grows beyond toy size, tile B across a 'parallel' grid so
    # v7x's second TensorCore is used; at B=2 a single 'arbitrary' step is best.
    pooled = pl.pallas_call(
        fused_encoder_kernel,
        out_shape=jax.ShapeDtypeStruct((B, D_MODEL), jnp.float32),
        grid=(1,),                                                    # single step, all fused
        in_specs=[_full_spec(a) for a in flat],
        out_specs=pl.BlockSpec((B, D_MODEL), lambda i: (0, 0)),
        compiler_params=pltpu.CompilerParams(dimension_semantics=("arbitrary",)),
    )(*flat)
    return pooled[None, :, :]                                          # seq-first (1, B, D)


# ------------------------ parameter construction -----------------------------
def init_params(key):
    ks = iter(jax.random.split(key, 32))

    def nrm(shape, s=0.02):
        return jax.random.normal(next(ks), shape, jnp.float32) * s

    p = {
        "label_embed": nrm((LABEL_VOCAB, EMB), 1.0),
        "bbox_embed": nrm((GRID, EMB), 1.0),
        "proj_w": nrm((5 * EMB, D_MODEL)),                   # Linear(640, d_model), pre-transposed
        "proj_b": jnp.zeros((D_MODEL,), jnp.float32),
        "fn_w": jnp.ones((1, D_MODEL), jnp.float32),
        "fn_b": jnp.zeros((1, D_MODEL), jnp.float32),
    }

    def stack(f):
        return jnp.stack([f() for _ in range(N_LAYERS)], axis=0)

    p["wqkv"] = stack(lambda: nrm((D_MODEL, 3 * D_MODEL)))   # fused Wq|Wk|Wv, pre-transposed
    p["bqkv"] = jnp.zeros((N_LAYERS, 1, 3 * D_MODEL), jnp.float32)
    p["wo"] = stack(lambda: nrm((D_MODEL, D_MODEL)))
    p["bo"] = jnp.zeros((N_LAYERS, 1, D_MODEL), jnp.float32)
    p["w1"] = stack(lambda: nrm((D_MODEL, DIM_FF)))
    p["b1"] = jnp.zeros((N_LAYERS, 1, DIM_FF), jnp.float32)
    p["w2"] = stack(lambda: nrm((DIM_FF, D_MODEL)))
    p["b2"] = jnp.zeros((N_LAYERS, 1, D_MODEL), jnp.float32)
    p["n1w"] = jnp.ones((N_LAYERS, 1, D_MODEL), jnp.float32)
    p["n1b"] = jnp.zeros((N_LAYERS, 1, D_MODEL), jnp.float32)
    p["n2w"] = jnp.ones((N_LAYERS, 1, D_MODEL), jnp.float32)
    p["n2b"] = jnp.zeros((N_LAYERS, 1, D_MODEL), jnp.float32)
    return p


# ---------------------------------- main --------------------------------------
if __name__ == "__main__":
    key = jax.random.PRNGKey(0)
    k_par, k_lab, k_box = jax.random.split(key, 3)

    params = init_params(k_par)

    labels = jax.random.randint(k_lab, (B, S), 0, LABEL_VOCAB, dtype=jnp.int32)
    bboxes = jax.random.randint(k_box, (B, S, 4), 0, GRID, dtype=jnp.int32)
    lengths = jnp.array([S, 5], dtype=jnp.int32)             # second sample is padded
    masks = (jnp.arange(S)[None, :] < lengths[:, None]).astype(jnp.float32)  # (B, S)

    memory = jax.jit(encoder_forward)(params, labels, bboxes, masks)
    memory = jax.block_until_ready(memory)

    assert memory.shape == (1, B, D_MODEL), memory.shape
    assert bool(jnp.all(jnp.isfinite(memory)))
    print("KERNEL_OK")
</pallas_src>

<mosaic_0001>
module attributes {stable_mosaic.version = 11 : i64} {
  func.func @fused_encoder_kernel(%arg0: i32, %arg1: memref<2x8x32xf32, #tpu.memory_space<vmem>>, %arg2: memref<2x8xf32, #tpu.memory_space<vmem>>, %arg3: memref<2x8x1xf32, #tpu.memory_space<vmem>>, %arg4: memref<2x32x96xf32, #tpu.memory_space<vmem>>, %arg5: memref<2x1x96xf32, #tpu.memory_space<vmem>>, %arg6: memref<2x32x32xf32, #tpu.memory_space<vmem>>, %arg7: memref<2x1x32xf32, #tpu.memory_space<vmem>>, %arg8: memref<2x32x64xf32, #tpu.memory_space<vmem>>, %arg9: memref<2x1x64xf32, #tpu.memory_space<vmem>>, %arg10: memref<2x64x32xf32, #tpu.memory_space<vmem>>, %arg11: memref<2x1x32xf32, #tpu.memory_space<vmem>>, %arg12: memref<2x1x32xf32, #tpu.memory_space<vmem>>, %arg13: memref<2x1x32xf32, #tpu.memory_space<vmem>>, %arg14: memref<2x1x32xf32, #tpu.memory_space<vmem>>, %arg15: memref<2x1x32xf32, #tpu.memory_space<vmem>>, %arg16: memref<1x32xf32, #tpu.memory_space<vmem>>, %arg17: memref<1x32xf32, #tpu.memory_space<vmem>>, %arg18: memref<2x32xf32, #tpu.memory_space<vmem>>) attributes {dimension_semantics = [#tpu.dimension_semantics<arbitrary>], iteration_bounds = array<i64: 1>, scalar_prefetch = 0 : i64, scratch_operands = 0 : i64, tpu.core_type = #tpu.core_type<tc>, window_params = [{pipeline_mode = #tpu.pipeline_mode<synchronous>, transform_indices = @transform_0, window_bounds = array<i64: 2, 8, 32>}, {pipeline_mode = #tpu.pipeline_mode<synchronous>, transform_indices = @transform_1, window_bounds = array<i64: 2, 8>}, {pipeline_mode = #tpu.pipeline_mode<synchronous>, transform_indices = @transform_2, window_bounds = array<i64: 2, 8, 1>}, {pipeline_mode = #tpu.pipeline_mode<synchronous>, transform_indices = @transform_3, window_bounds = array<i64: 2, 32, 96>}, {pipeline_mode = #tpu.pipeline_mode<synchronous>, transform_indices = @transform_4, window_bounds = array<i64: 2, 1, 96>}, {pipeline_mode = #tpu.pipeline_mode<synchronous>, transform_indices = @transform_5, window_bounds = array<i64: 2, 32, 32>}, {pipeline_mode = #tpu.pipeline_mode<synchronous>, transform_indices = @transform_6, window_bounds = array<i64: 2, 1, 32>}, {pipeline_mode = #tpu.pipeline_mode<synchronous>, transform_indices = @transform_7, window_bounds = array<i64: 2, 32, 64>}, {pipeline_mode = #tpu.pipeline_mode<synchronous>, transform_indices = @transform_8, window_bounds = array<i64: 2, 1, 64>}, {pipeline_mode = #tpu.pipeline_mode<synchronous>, transform_indices = @transform_9, window_bounds = array<i64: 2, 64, 32>}, {pipeline_mode = #tpu.pipeline_mode<synchronous>, transform_indices = @transform_10, window_bounds = array<i64: 2, 1, 32>}, {pipeline_mode = #tpu.pipeline_mode<synchronous>, transform_indices = @transform_11, window_bounds = array<i64: 2, 1, 32>}, {pipeline_mode = #tpu.pipeline_mode<synchronous>, transform_indices = @transform_12, window_bounds = array<i64: 2, 1, 32>}, {pipeline_mode = #tpu.pipeline_mode<synchronous>, transform_indices = @transform_13, window_bounds = array<i64: 2, 1, 32>}, {pipeline_mode = #tpu.pipeline_mode<synchronous>, transform_indices = @transform_14, window_bounds = array<i64: 2, 1, 32>}, {pipeline_mode = #tpu.pipeline_mode<synchronous>, transform_indices = @transform_15, window_bounds = array<i64: 1, 32>}, {pipeline_mode = #tpu.pipeline_mode<synchronous>, transform_indices = @transform_16, window_bounds = array<i64: 1, 32>}, {pipeline_mode = #tpu.pipeline_mode<synchronous>, transform_indices = @transform_17, window_bounds = array<i64: 2, 32>}]} {
    %c0 = arith.constant 0 : index
    %c0_0 = arith.constant 0 : index
    %c0_1 = arith.constant 0 : index
    %0 = vector.load %arg1[%c0, %c0_0, %c0_1] : memref<2x8x32xf32, #tpu.memory_space<vmem>>, vector<2x8x32xf32>
    %1 = vector.shape_cast %0 : vector<2x8x32xf32> to vector<16x32xf32>
    %c0_2 = arith.constant 0 : index
    %c0_3 = arith.constant 0 : index
    %2 = vector.load %arg2[%c0_2, %c0_3] : memref<2x8xf32, #tpu.memory_space<vmem>>, vector<2x8xf32>
    %cst = arith.constant 1.000000e+00 : f32
    %3 = vector.broadcast %cst : f32 to vector<2x8xf32>
    %4 = arith.subf %3, %2 : vector<2x8xf32>
    %cst_4 = arith.constant -1.000000e+30 : f32
    %5 = vector.broadcast %cst_4 : f32 to vector<2x8xf32>
    %6 = arith.mulf %4, %5 : vector<2x8xf32>
    %7 = vector.shape_cast %6 : vector<2x8xf32> to vector<2x1x8xf32>
    %8 = tpu.concatenate %7, %7, %7, %7 in 0 : vector<2x1x8xf32>, vector<2x1x8xf32>, vector<2x1x8xf32>, vector<2x1x8xf32> -> vector<8x1x8xf32>
    %c0_5 = arith.constant 0 : index
    %c0_6 = arith.constant 0 : index
    %c0_7 = arith.constant 0 : index
    %9 = vector.load %arg4[%c0_5, %c0_6, %c0_7] : memref<2x32x96xf32, #tpu.memory_space<vmem>>, vector<1x32x96xf32>
    %10 = vector.shape_cast %9 : vector<1x32x96xf32> to vector<32x96xf32>
    %cst_8 = arith.constant dense<0.000000e+00> : vector<16x96xf32>
    %11 = tpu.matmul %1, %10, %cst_8 {dimension_numbers = #tpu.dot_dimension_numbers<[1], [0], [0], [1], [0, 0, 1, 1], [], []>} : vector<16x32xf32>, vector<32x96xf32>, vector<16x96xf32> -> vector<16x96xf32>
    %c0_9 = arith.constant 0 : index
    %c0_10 = arith.constant 0 : index
    %c0_11 = arith.constant 0 : index
    %12 = vector.load %arg5[%c0_9, %c0_10, %c0_11] : memref<2x1x96xf32, #tpu.memory_space<vmem>>, vector<1x1x96xf32>
    %13 = vector.shape_cast %12 : vector<1x1x96xf32> to vector<1x96xf32>
    %14 = vector.broadcast %13 : vector<1x96xf32> to vector<16x96xf32>
    %15 = arith.addf %11, %14 : vector<16x96xf32>
    %16 = vector.extract_strided_slice %15 {offsets = [0, 0], sizes = [16, 32], strides = [1, 1]} : vector<16x96xf32> to vector<16x32xf32>
    %17 = vector.shape_cast %16 : vector<16x32xf32> to vector<2x8x32xf32>
    %18 = vector.extract_strided_slice %15 {offsets = [0, 32], sizes = [16, 32], strides = [1, 1]} : vector<16x96xf32> to vector<16x32xf32>
    %19 = vector.shape_cast %18 : vector<16x32xf32> to vector<2x8x32xf32>
    %20 = vector.extract_strided_slice %15 {offsets = [0, 64], sizes = [16, 32], strides = [1, 1]} : vector<16x96xf32> to vector<16x32xf32>
    %21 = vector.shape_cast %20 : vector<16x32xf32> to vector<2x8x32xf32>
    %22 = vector.extract_strided_slice %17 {offsets = [0, 0, 0], sizes = [2, 8, 8], strides = [1, 1, 1]} : vector<2x8x32xf32> to vector<2x8x8xf32>
    %23 = vector.extract_strided_slice %17 {offsets = [0, 0, 8], sizes = [2, 8, 8], strides = [1, 1, 1]} : vector<2x8x32xf32> to vector<2x8x8xf32>
    %24 = vector.extract_strided_slice %17 {offsets = [0, 0, 16], sizes = [2, 8, 8], strides = [1, 1, 1]} : vector<2x8x32xf32> to vector<2x8x8xf32>
    %25 = vector.extract_strided_slice %17 {offsets = [0, 0, 24], sizes = [2, 8, 8], strides = [1, 1, 1]} : vector<2x8x32xf32> to vector<2x8x8xf32>
    %26 = tpu.concatenate %22, %23, %24, %25 in 0 : vector<2x8x8xf32>, vector<2x8x8xf32>, vector<2x8x8xf32>, vector<2x8x8xf32> -> vector<8x8x8xf32>
    %27 = vector.extract_strided_slice %19 {offsets = [0, 0, 0], sizes = [2, 8, 8], strides = [1, 1, 1]} : vector<2x8x32xf32> to vector<2x8x8xf32>
    %28 = vector.extract_strided_slice %19 {offsets = [0, 0, 8], sizes = [2, 8, 8], strides = [1, 1, 1]} : vector<2x8x32xf32> to vector<2x8x8xf32>
    %29 = vector.extract_strided_slice %19 {offsets = [0, 0, 16], sizes = [2, 8, 8], strides = [1, 1, 1]} : vector<2x8x32xf32> to vector<2x8x8xf32>
    %30 = vector.extract_strided_slice %19 {offsets = [0, 0, 24], sizes = [2, 8, 8], strides = [1, 1, 1]} : vector<2x8x32xf32> to vector<2x8x8xf32>
    %31 = tpu.concatenate %27, %28, %29, %30 in 0 : vector<2x8x8xf32>, vector<2x8x8xf32>, vector<2x8x8xf32>, vector<2x8x8xf32> -> vector<8x8x8xf32>
    %32 = vector.extract_strided_slice %21 {offsets = [0, 0, 0], sizes = [2, 8, 8], strides = [1, 1, 1]} : vector<2x8x32xf32> to vector<2x8x8xf32>
    %33 = vector.extract_strided_slice %21 {offsets = [0, 0, 8], sizes = [2, 8, 8], strides = [1, 1, 1]} : vector<2x8x32xf32> to vector<2x8x8xf32>
    %34 = vector.extract_strided_slice %21 {offsets = [0, 0, 16], sizes = [2, 8, 8], strides = [1, 1, 1]} : vector<2x8x32xf32> to vector<2x8x8xf32>
    %35 = vector.extract_strided_slice %21 {offsets = [0, 0, 24], sizes = [2, 8, 8], strides = [1, 1, 1]} : vector<2x8x32xf32> to vector<2x8x8xf32>
    %36 = tpu.concatenate %32, %33, %34, %35 in 0 : vector<2x8x8xf32>, vector<2x8x8xf32>, vector<2x8x8xf32>, vector<2x8x8xf32> -> vector<8x8x8xf32>
    %cst_12 = arith.constant 0.353553385 : f32
    %37 = vector.broadcast %cst_12 : f32 to vector<8x8x8xf32>
    %38 = arith.mulf %26, %37 : vector<8x8x8xf32>
    "tpu.trace_start"() <{level = 10 : i32, message = "zqd,zkd->zqk"}> : () -> ()
    %cst_13 = arith.constant dense<0.000000e+00> : vector<8x8x8xf32>
    %39 = tpu.matmul %38, %31, %cst_13 {dimension_numbers = #tpu.dot_dimension_numbers<[2], [2], [1], [1], [0, 0, 0, 1, 1, 1], [0], [0]>} : vector<8x8x8xf32>, vector<8x8x8xf32>, vector<8x8x8xf32> -> vector<8x8x8xf32>
    "tpu.trace_stop"() : () -> ()
    %40 = vector.broadcast %8 : vector<8x1x8xf32> to vector<8x8x8xf32>
    %41 = arith.addf %39, %40 : vector<8x8x8xf32>
    %cst_14 = arith.constant dense<0xFF800000> : vector<8x8xf32>
    %42 = vector.multi_reduction <maximumf>, %41, %cst_14 [2] : vector<8x8x8xf32> to vector<8x8xf32>
    %43 = vector.shape_cast %42 : vector<8x8xf32> to vector<8x8x1xf32>
    %44 = vector.broadcast %43 : vector<8x8x1xf32> to vector<8x8x8xf32>
    %45 = arith.subf %41, %44 : vector<8x8x8xf32>
    %46 = math.exp %45 : vector<8x8x8xf32>
    %cst_15 = arith.constant dense<0.000000e+00> : vector<8x8xf32>
    %47 = vector.multi_reduction <add>, %46, %cst_15 [2] : vector<8x8x8xf32> to vector<8x8xf32>
    %48 = vector.shape_cast %47 : vector<8x8xf32> to vector<8x8x1xf32>
    %49 = tpu.reciprocal %48 {approx = true} : vector<8x8x1xf32> -> vector<8x8x1xf32>
    %50 = vector.broadcast %49 : vector<8x8x1xf32> to vector<8x8x8xf32>
    %51 = arith.mulf %46, %50 : vector<8x8x8xf32>
    "tpu.trace_start"() <{level = 10 : i32, message = "zqk,zkd->zqd"}> : () -> ()
    %cst_16 = arith.constant dense<0.000000e+00> : vector<8x8x8xf32>
    %52 = tpu.matmul %51, %36, %cst_16 {dimension_numbers = #tpu.dot_dimension_numbers<[2], [1], [1], [2], [0, 0, 0, 1, 1, 2], [0], [0]>} : vector<8x8x8xf32>, vector<8x8x8xf32>, vector<8x8x8xf32> -> vector<8x8x8xf32>
    "tpu.trace_stop"() : () -> ()
    %53 = vector.extract_strided_slice %52 {offsets = [0, 0, 0], sizes = [2, 8, 8], strides = [1, 1, 1]} : vector<8x8x8xf32> to vector<2x8x8xf32>
    %54 = vector.extract_strided_slice %52 {offsets = [2, 0, 0], sizes = [2, 8, 8], strides = [1, 1, 1]} : vector<8x8x8xf32> to vector<2x8x8xf32>
    %55 = vector.extract_strided_slice %52 {offsets = [4, 0, 0], sizes = [2, 8, 8], strides = [1, 1, 1]} : vector<8x8x8xf32> to vector<2x8x8xf32>
    %56 = vector.extract_strided_slice %52 {offsets = [6, 0, 0], sizes = [2, 8, 8], strides = [1, 1, 1]} : vector<8x8x8xf32> to vector<2x8x8xf32>
    %57 = tpu.concatenate %53, %54, %55, %56 in 2 : vector<2x8x8xf32>, vector<2x8x8xf32>, vector<2x8x8xf32>, vector<2x8x8xf32> -> vector<2x8x32xf32>
    %58 = vector.shape_cast %57 : vector<2x8x32xf32> to vector<16x32xf32>
    %c0_17 = arith.constant 0 : index
    %c0_18 = arith.constant 0 : index
    %c0_19 = arith.constant 0 : index
    %59 = vector.load %arg6[%c0_17, %c0_18, %c0_19] : memref<2x32x32xf32, #tpu.memory_space<vmem>>, vector<1x32x32xf32>
    %60 = vector.shape_cast %59 : vector<1x32x32xf32> to vector<32x32xf32>
    %cst_20 = arith.constant dense<0.000000e+00> : vector<16x32xf32>
    %61 = tpu.matmul %58, %60, %cst_20 {dimension_numbers = #tpu.dot_dimension_numbers<[1], [0], [0], [1], [0, 0, 1, 1], [], []>} : vector<16x32xf32>, vector<32x32xf32>, vector<16x32xf32> -> vector<16x32xf32>
    %c0_21 = arith.constant 0 : index
    %c0_22 = arith.constant 0 : index
    %c0_23 = arith.constant 0 : index
    %62 = vector.load %arg7[%c0_21, %c0_22, %c0_23] : memref<2x1x32xf32, #tpu.memory_space<vmem>>, vector<1x1x32xf32>
    %63 = vector.shape_cast %62 : vector<1x1x32xf32> to vector<1x32xf32>
    %64 = vector.broadcast %63 : vector<1x32xf32> to vector<16x32xf32>
    %65 = arith.addf %61, %64 : vector<16x32xf32>
    %66 = arith.addf %1, %65 : vector<16x32xf32>
    %c0_24 = arith.constant 0 : index
    %c0_25 = arith.constant 0 : index
    %c0_26 = arith.constant 0 : index
    %67 = vector.load %arg12[%c0_24, %c0_25, %c0_26] : memref<2x1x32xf32, #tpu.memory_space<vmem>>, vector<1x1x32xf32>
    %68 = vector.shape_cast %67 : vector<1x1x32xf32> to vector<1x32xf32>
    %c0_27 = arith.constant 0 : index
    %c0_28 = arith.constant 0 : index
    %c0_29 = arith.constant 0 : index
    %69 = vector.load %arg13[%c0_27, %c0_28, %c0_29] : memref<2x1x32xf32, #tpu.memory_space<vmem>>, vector<1x1x32xf32>
    %70 = vector.shape_cast %69 : vector<1x1x32xf32> to vector<1x32xf32>
    %cst_30 = arith.constant dense<0.000000e+00> : vector<16xf32>
    %71 = vector.multi_reduction <add>, %66, %cst_30 [1] : vector<16x32xf32> to vector<16xf32>
    %72 = vector.shape_cast %71 : vector<16xf32> to vector<16x1xf32>
    %cst_31 = arith.constant 3.200000e+01 : f32
    %73 = vector.broadcast %cst_31 : f32 to vector<16x1xf32>
    %74 = arith.divf %72, %73 : vector<16x1xf32>
    %75 = vector.broadcast %74 : vector<16x1xf32> to vector<16x32xf32>
    %76 = arith.subf %66, %75 : vector<16x32xf32>
    %77 = arith.mulf %76, %76 : vector<16x32xf32>
    %cst_32 = arith.constant dense<0.000000e+00> : vector<16xf32>
    %78 = vector.multi_reduction <add>, %77, %cst_32 [1] : vector<16x32xf32> to vector<16xf32>
    %79 = vector.shape_cast %78 : vector<16xf32> to vector<16x1xf32>
    %cst_33 = arith.constant 3.200000e+01 : f32
    %80 = vector.broadcast %cst_33 : f32 to vector<16x1xf32>
    %81 = arith.divf %79, %80 : vector<16x1xf32>
    %82 = vector.broadcast %74 : vector<16x1xf32> to vector<16x32xf32>
    %83 = arith.subf %66, %82 : vector<16x32xf32>
    %cst_34 = arith.constant 9.99999974E-6 : f32
    %84 = vector.broadcast %cst_34 : f32 to vector<16x1xf32>
    %85 = arith.addf %81, %84 : vector<16x1xf32>
    %86 = math.rsqrt %85 : vector<16x1xf32>
    %87 = vector.broadcast %86 : vector<16x1xf32> to vector<16x32xf32>
    %88 = arith.mulf %83, %87 : vector<16x32xf32>
    %89 = vector.broadcast %68 : vector<1x32xf32> to vector<16x32xf32>
    %90 = arith.mulf %88, %89 : vector<16x32xf32>
    %91 = vector.broadcast %70 : vector<1x32xf32> to vector<16x32xf32>
    %92 = arith.addf %90, %91 : vector<16x32xf32>
    %c0_35 = arith.constant 0 : index
    %c0_36 = arith.constant 0 : index
    %c0_37 = arith.constant 0 : index
    %93 = vector.load %arg8[%c0_35, %c0_36, %c0_37] : memref<2x32x64xf32, #tpu.memory_space<vmem>>, vector<1x32x64xf32>
    %94 = vector.shape_cast %93 : vector<1x32x64xf32> to vector<32x64xf32>
    %cst_38 = arith.constant dense<0.000000e+00> : vector<16x64xf32>
    %95 = tpu.matmul %92, %94, %cst_38 {dimension_numbers = #tpu.dot_dimension_numbers<[1], [0], [0], [1], [0, 0, 1, 1], [], []>} : vector<16x32xf32>, vector<32x64xf32>, vector<16x64xf32> -> vector<16x64xf32>
    %c0_39 = arith.constant 0 : index
    %c0_40 = arith.constant 0 : index
    %c0_41 = arith.constant 0 : index
    %96 = vector.load %arg9[%c0_39, %c0_40, %c0_41] : memref<2x1x64xf32, #tpu.memory_space<vmem>>, vector<1x1x64xf32>
    %97 = vector.shape_cast %96 : vector<1x1x64xf32> to vector<1x64xf32>
    %98 = vector.broadcast %97 : vector<1x64xf32> to vector<16x64xf32>
    %99 = arith.addf %95, %98 : vector<16x64xf32>
    %cst_42 = arith.constant 0.000000e+00 : f32
    %100 = vector.broadcast %cst_42 : f32 to vector<16x64xf32>
    %101 = arith.maximumf %99, %100 : vector<16x64xf32>
    %c0_43 = arith.constant 0 : index
    %c0_44 = arith.constant 0 : index
    %c0_45 = arith.constant 0 : index
    %102 = vector.load %arg10[%c0_43, %c0_44, %c0_45] : memref<2x64x32xf32, #tpu.memory_space<vmem>>, vector<1x64x32xf32>
    %103 = vector.shape_cast %102 : vector<1x64x32xf32> to vector<64x32xf32>
    %cst_46 = arith.constant dense<0.000000e+00> : vector<16x32xf32>
    %104 = tpu.matmul %101, %103, %cst_46 {dimension_numbers = #tpu.dot_dimension_numbers<[1], [0], [0], [1], [0, 0, 1, 1], [], []>} : vector<16x64xf32>, vector<64x32xf32>, vector<16x32xf32> -> vector<16x32xf32>
    %c0_47 = arith.constant 0 : index
    %c0_48 = arith.constant 0 : index
    %c0_49 = arith.constant 0 : index
    %105 = vector.load %arg11[%c0_47, %c0_48, %c0_49] : memref<2x1x32xf32, #tpu.memory_space<vmem>>, vector<1x1x32xf32>
    %106 = vector.shape_cast %105 : vector<1x1x32xf32> to vector<1x32xf32>
    %107 = vector.broadcast %106 : vector<1x32xf32> to vector<16x32xf32>
    %108 = arith.addf %104, %107 : vector<16x32xf32>
    %109 = arith.addf %92, %108 : vector<16x32xf32>
    %c0_50 = arith.constant 0 : index
    %c0_51 = arith.constant 0 : index
    %c0_52 = arith.constant 0 : index
    %110 = vector.load %arg14[%c0_50, %c0_51, %c0_52] : memref<2x1x32xf32, #tpu.memory_space<vmem>>, vector<1x1x32xf32>
    %111 = vector.shape_cast %110 : vector<1x1x32xf32> to vector<1x32xf32>
    %c0_53 = arith.constant 0 : index
    %c0_54 = arith.constant 0 : index
    %c0_55 = arith.constant 0 : index
    %112 = vector.load %arg15[%c0_53, %c0_54, %c0_55] : memref<2x1x32xf32, #tpu.memory_space<vmem>>, vector<1x1x32xf32>
    %113 = vector.shape_cast %112 : vector<1x1x32xf32> to vector<1x32xf32>
    %cst_56 = arith.constant dense<0.000000e+00> : vector<16xf32>
    %114 = vector.multi_reduction <add>, %109, %cst_56 [1] : vector<16x32xf32> to vector<16xf32>
    %115 = vector.shape_cast %114 : vector<16xf32> to vector<16x1xf32>
    %cst_57 = arith.constant 3.200000e+01 : f32
    %116 = vector.broadcast %cst_57 : f32 to vector<16x1xf32>
    %117 = arith.divf %115, %116 : vector<16x1xf32>
    %118 = vector.broadcast %117 : vector<16x1xf32> to vector<16x32xf32>
    %119 = arith.subf %109, %118 : vector<16x32xf32>
    %120 = arith.mulf %119, %119 : vector<16x32xf32>
    %cst_58 = arith.constant dense<0.000000e+00> : vector<16xf32>
    %121 = vector.multi_reduction <add>, %120, %cst_58 [1] : vector<16x32xf32> to vector<16xf32>
    %122 = vector.shape_cast %121 : vector<16xf32> to vector<16x1xf32>
    %cst_59 = arith.constant 3.200000e+01 : f32
    %123 = vector.broadcast %cst_59 : f32 to vector<16x1xf32>
    %124 = arith.divf %122, %123 : vector<16x1xf32>
    %125 = vector.broadcast %117 : vector<16x1xf32> to vector<16x32xf32>
    %126 = arith.subf %109, %125 : vector<16x32xf32>
    %cst_60 = arith.constant 9.99999974E-6 : f32
    %127 = vector.broadcast %cst_60 : f32 to vector<16x1xf32>
    %128 = arith.addf %124, %127 : vector<16x1xf32>
    %129 = math.rsqrt %128 : vector<16x1xf32>
    %130 = vector.broadcast %129 : vector<16x1xf32> to vector<16x32xf32>
    %131 = arith.mulf %126, %130 : vector<16x32xf32>
    %132 = vector.broadcast %111 : vector<1x32xf32> to vector<16x32xf32>
    %133 = arith.mulf %131, %132 : vector<16x32xf32>
    %134 = vector.broadcast %113 : vector<1x32xf32> to vector<16x32xf32>
    %135 = arith.addf %133, %134 : vector<16x32xf32>
    %c1 = arith.constant 1 : index
    %c0_61 = arith.constant 0 : index
    %c0_62 = arith.constant 0 : index
    %136 = vector.load %arg4[%c1, %c0_61, %c0_62] : memref<2x32x96xf32, #tpu.memory_space<vmem>>, vector<1x32x96xf32>
    %137 = vector.shape_cast %136 : vector<1x32x96xf32> to vector<32x96xf32>
    %cst_63 = arith.constant dense<0.000000e+00> : vector<16x96xf32>
    %138 = tpu.matmul %135, %137, %cst_63 {dimension_numbers = #tpu.dot_dimension_numbers<[1], [0], [0], [1], [0, 0, 1, 1], [], []>} : vector<16x32xf32>, vector<32x96xf32>, vector<16x96xf32> -> vector<16x96xf32>
    %c1_64 = arith.constant 1 : index
    %c0_65 = arith.constant 0 : index
    %c0_66 = arith.constant 0 : index
    %139 = vector.load %arg5[%c1_64, %c0_65, %c0_66] : memref<2x1x96xf32, #tpu.memory_space<vmem>>, vector<1x1x96xf32>
    %140 = vector.shape_cast %139 : vector<1x1x96xf32> to vector<1x96xf32>
    %141 = vector.broadcast %140 : vector<1x96xf32> to vector<16x96xf32>
    %142 = arith.addf %138, %141 : vector<16x96xf32>
    %143 = vector.extract_strided_slice %142 {offsets = [0, 0], sizes = [16, 32], strides = [1, 1]} : vector<16x96xf32> to vector<16x32xf32>
    %144 = vector.shape_cast %143 : vector<16x32xf32> to vector<2x8x32xf32>
    %145 = vector.extract_strided_slice %142 {offsets = [0, 32], sizes = [16, 32], strides = [1, 1]} : vector<16x96xf32> to vector<16x32xf32>
    %146 = vector.shape_cast %145 : vector<16x32xf32> to vector<2x8x32xf32>
    %147 = vector.extract_strided_slice %142 {offsets = [0, 64], sizes = [16, 32], strides = [1, 1]} : vector<16x96xf32> to vector<16x32xf32>
    %148 = vector.shape_cast %147 : vector<16x32xf32> to vector<2x8x32xf32>
    %149 = vector.extract_strided_slice %144 {offsets = [0, 0, 0], sizes = [2, 8, 8], strides = [1, 1, 1]} : vector<2x8x32xf32> to vector<2x8x8xf32>
    %150 = vector.extract_strided_slice %144 {offsets = [0, 0, 8], sizes = [2, 8, 8], strides = [1, 1, 1]} : vector<2x8x32xf32> to vector<2x8x8xf32>
    %151 = vector.extract_strided_slice %144 {offsets = [0, 0, 16], sizes = [2, 8, 8], strides = [1, 1, 1]} : vector<2x8x32xf32> to vector<2x8x8xf32>
    %152 = vector.extract_strided_slice %144 {offsets = [0, 0, 24], sizes = [2, 8, 8], strides = [1, 1, 1]} : vector<2x8x32xf32> to vector<2x8x8xf32>
    %153 = tpu.concatenate %149, %150, %151, %152 in 0 : vector<2x8x8xf32>, vector<2x8x8xf32>, vector<2x8x8xf32>, vector<2x8x8xf32> -> vector<8x8x8xf32>
    %154 = vector.extract_strided_slice %146 {offsets = [0, 0, 0], sizes = [2, 8, 8], strides = [1, 1, 1]} : vector<2x8x32xf32> to vector<2x8x8xf32>
    %155 = vector.extract_strided_slice %146 {offsets = [0, 0, 8], sizes = [2, 8, 8], strides = [1, 1, 1]} : vector<2x8x32xf32> to vector<2x8x8xf32>
    %156 = vector.extract_strided_slice %146 {offsets = [0, 0, 16], sizes = [2, 8, 8], strides = [1, 1, 1]} : vector<2x8x32xf32> to vector<2x8x8xf32>
    %157 = vector.extract_strided_slice %146 {offsets = [0, 0, 24], sizes = [2, 8, 8], strides = [1, 1, 1]} : vector<2x8x32xf32> to vector<2x8x8xf32>
    %158 = tpu.concatenate %154, %155, %156, %157 in 0 : vector<2x8x8xf32>, vector<2x8x8xf32>, vector<2x8x8xf32>, vector<2x8x8xf32> -> vector<8x8x8xf32>
    %159 = vector.extract_strided_slice %148 {offsets = [0, 0, 0], sizes = [2, 8, 8], strides = [1, 1, 1]} : vector<2x8x32xf32> to vector<2x8x8xf32>
    %160 = vector.extract_strided_slice %148 {offsets = [0, 0, 8], sizes = [2, 8, 8], strides = [1, 1, 1]} : vector<2x8x32xf32> to vector<2x8x8xf32>
    %161 = vector.extract_strided_slice %148 {offsets = [0, 0, 16], sizes = [2, 8, 8], strides = [1, 1, 1]} : vector<2x8x32xf32> to vector<2x8x8xf32>
    %162 = vector.extract_strided_slice %148 {offsets = [0, 0, 24], sizes = [2, 8, 8], strides = [1, 1, 1]} : vector<2x8x32xf32> to vector<2x8x8xf32>
    %163 = tpu.concatenate %159, %160, %161, %162 in 0 : vector<2x8x8xf32>, vector<2x8x8xf32>, vector<2x8x8xf32>, vector<2x8x8xf32> -> vector<8x8x8xf32>
    %cst_67 = arith.constant 0.353553385 : f32
    %164 = vector.broadcast %cst_67 : f32 to vector<8x8x8xf32>
    %165 = arith.mulf %153, %164 : vector<8x8x8xf32>
    "tpu.trace_start"() <{level = 10 : i32, message = "zqd,zkd->zqk"}> : () -> ()
    %cst_68 = arith.constant dense<0.000000e+00> : vector<8x8x8xf32>
    %166 = tpu.matmul %165, %158, %cst_68 {dimension_numbers = #tpu.dot_dimension_numbers<[2], [2], [1], [1], [0, 0, 0, 1, 1, 1], [0], [0]>} : vector<8x8x8xf32>, vector<8x8x8xf32>, vector<8x8x8xf32> -> vector<8x8x8xf32>
    "tpu.trace_stop"() : () -> ()
    %167 = vector.broadcast %8 : vector<8x1x8xf32> to vector<8x8x8xf32>
    %168 = arith.addf %166, %167 : vector<8x8x8xf32>
    %cst_69 = arith.constant dense<0xFF800000> : vector<8x8xf32>
    %169 = vector.multi_reduction <maximumf>, %168, %cst_69 [2] : vector<8x8x8xf32> to vector<8x8xf32>
    %170 = vector.shape_cast %169 : vector<8x8xf32> to vector<8x8x1xf32>
    %171 = vector.broadcast %170 : vector<8x8x1xf32> to vector<8x8x8xf32>
    %172 = arith.subf %168, %171 : vector<8x8x8xf32>
    %173 = math.exp %172 : vector<8x8x8xf32>
    %cst_70 = arith.constant dense<0.000000e+00> : vector<8x8xf32>
    %174 = vector.multi_reduction <add>, %173, %cst_70 [2] : vector<8x8x8xf32> to vector<8x8xf32>
    %175 = vector.shape_cast %174 : vector<8x8xf32> to vector<8x8x1xf32>
    %176 = tpu.reciprocal %175 {approx = true} : vector<8x8x1xf32> -> vector<8x8x1xf32>
    %177 = vector.broadcast %176 : vector<8x8x1xf32> to vector<8x8x8xf32>
    %178 = arith.mulf %173, %177 : vector<8x8x8xf32>
    "tpu.trace_start"() <{level = 10 : i32, message = "zqk,zkd->zqd"}> : () -> ()
    %cst_71 = arith.constant dense<0.000000e+00> : vector<8x8x8xf32>
    %179 = tpu.matmul %178, %163, %cst_71 {dimension_numbers = #tpu.dot_dimension_numbers<[2], [1], [1], [2], [0, 0, 0, 1, 1, 2], [0], [0]>} : vector<8x8x8xf32>, vector<8x8x8xf32>, vector<8x8x8xf32> -> vector<8x8x8xf32>
    "tpu.trace_stop"() : () -> ()
    %180 = vector.extract_strided_slice %179 {offsets = [0, 0, 0], sizes = [2, 8, 8], strides = [1, 1, 1]} : vector<8x8x8xf32> to vector<2x8x8xf32>
    %181 = vector.extract_strided_slice %179 {offsets = [2, 0, 0], sizes = [2, 8, 8], strides = [1, 1, 1]} : vector<8x8x8xf32> to vector<2x8x8xf32>
    %182 = vector.extract_strided_slice %179 {offsets = [4, 0, 0], sizes = [2, 8, 8], strides = [1, 1, 1]} : vector<8x8x8xf32> to vector<2x8x8xf32>
    %183 = vector.extract_strided_slice %179 {offsets = [6, 0, 0], sizes = [2, 8, 8], strides = [1, 1, 1]} : vector<8x8x8xf32> to vector<2x8x8xf32>
    %184 = tpu.concatenate %180, %181, %182, %183 in 2 : vector<2x8x8xf32>, vector<2x8x8xf32>, vector<2x8x8xf32>, vector<2x8x8xf32> -> vector<2x8x32xf32>
    %185 = vector.shape_cast %184 : vector<2x8x32xf32> to vector<16x32xf32>
    %c1_72 = arith.constant 1 : index
    %c0_73 = arith.constant 0 : index
    %c0_74 = arith.constant 0 : index
    %186 = vector.load %arg6[%c1_72, %c0_73, %c0_74] : memref<2x32x32xf32, #tpu.memory_space<vmem>>, vector<1x32x32xf32>
    %187 = vector.shape_cast %186 : vector<1x32x32xf32> to vector<32x32xf32>
    %cst_75 = arith.constant dense<0.000000e+00> : vector<16x32xf32>
    %188 = tpu.matmul %185, %187, %cst_75 {dimension_numbers = #tpu.dot_dimension_numbers<[1], [0], [0], [1], [0, 0, 1, 1], [], []>} : vector<16x32xf32>, vector<32x32xf32>, vector<16x32xf32> -> vector<16x32xf32>
    %c1_76 = arith.constant 1 : index
    %c0_77 = arith.constant 0 : index
    %c0_78 = arith.constant 0 : index
    %189 = vector.load %arg7[%c1_76, %c0_77, %c0_78] : memref<2x1x32xf32, #tpu.memory_space<vmem>>, vector<1x1x32xf32>
    %190 = vector.shape_cast %189 : vector<1x1x32xf32> to vector<1x32xf32>
    %191 = vector.broadcast %190 : vector<1x32xf32> to vector<16x32xf32>
    %192 = arith.addf %188, %191 : vector<16x32xf32>
    %193 = arith.addf %135, %192 : vector<16x32xf32>
    %c1_79 = arith.constant 1 : index
    %c0_80 = arith.constant 0 : index
    %c0_81 = arith.constant 0 : index
    %194 = vector.load %arg12[%c1_79, %c0_80, %c0_81] : memref<2x1x32xf32, #tpu.memory_space<vmem>>, vector<1x1x32xf32>
    %195 = vector.shape_cast %194 : vector<1x1x32xf32> to vector<1x32xf32>
    %c1_82 = arith.constant 1 : index
    %c0_83 = arith.constant 0 : index
    %c0_84 = arith.constant 0 : index
    %196 = vector.load %arg13[%c1_82, %c0_83, %c0_84] : memref<2x1x32xf32, #tpu.memory_space<vmem>>, vector<1x1x32xf32>
    %197 = vector.shape_cast %196 : vector<1x1x32xf32> to vector<1x32xf32>
    %cst_85 = arith.constant dense<0.000000e+00> : vector<16xf32>
    %198 = vector.multi_reduction <add>, %193, %cst_85 [1] : vector<16x32xf32> to vector<16xf32>
    %199 = vector.shape_cast %198 : vector<16xf32> to vector<16x1xf32>
    %cst_86 = arith.constant 3.200000e+01 : f32
    %200 = vector.broadcast %cst_86 : f32 to vector<16x1xf32>
    %201 = arith.divf %199, %200 : vector<16x1xf32>
    %202 = vector.broadcast %201 : vector<16x1xf32> to vector<16x32xf32>
    %203 = arith.subf %193, %202 : vector<16x32xf32>
    %204 = arith.mulf %203, %203 : vector<16x32xf32>
    %cst_87 = arith.constant dense<0.000000e+00> : vector<16xf32>
    %205 = vector.multi_reduction <add>, %204, %cst_87 [1] : vector<16x32xf32> to vector<16xf32>
    %206 = vector.shape_cast %205 : vector<16xf32> to vector<16x1xf32>
    %cst_88 = arith.constant 3.200000e+01 : f32
    %207 = vector.broadcast %cst_88 : f32 to vector<16x1xf32>
    %208 = arith.divf %206, %207 : vector<16x1xf32>
    %209 = vector.broadcast %201 : vector<16x1xf32> to vector<16x32xf32>
    %210 = arith.subf %193, %209 : vector<16x32xf32>
    %cst_89 = arith.constant 9.99999974E-6 : f32
    %211 = vector.broadcast %cst_89 : f32 to vector<16x1xf32>
    %212 = arith.addf %208, %211 : vector<16x1xf32>
    %213 = math.rsqrt %212 : vector<16x1xf32>
    %214 = vector.broadcast %213 : vector<16x1xf32> to vector<16x32xf32>
    %215 = arith.mulf %210, %214 : vector<16x32xf32>
    %216 = vector.broadcast %195 : vector<1x32xf32> to vector<16x32xf32>
    %217 = arith.mulf %215, %216 : vector<16x32xf32>
    %218 = vector.broadcast %197 : vector<1x32xf32> to vector<16x32xf32>
    %219 = arith.addf %217, %218 : vector<16x32xf32>
    %c1_90 = arith.constant 1 : index
    %c0_91 = arith.constant 0 : index
    %c0_92 = arith.constant 0 : index
    %220 = vector.load %arg8[%c1_90, %c0_91, %c0_92] : memref<2x32x64xf32, #tpu.memory_space<vmem>>, vector<1x32x64xf32>
    %221 = vector.shape_cast %220 : vector<1x32x64xf32> to vector<32x64xf32>
    %cst_93 = arith.constant dense<0.000000e+00> : vector<16x64xf32>
    %222 = tpu.matmul %219, %221, %cst_93 {dimension_numbers = #tpu.dot_dimension_numbers<[1], [0], [0], [1], [0, 0, 1, 1], [], []>} : vector<16x32xf32>, vector<32x64xf32>, vector<16x64xf32> -> vector<16x64xf32>
    %c1_94 = arith.constant 1 : index
    %c0_95 = arith.constant 0 : index
    %c0_96 = arith.constant 0 : index
    %223 = vector.load %arg9[%c1_94, %c0_95, %c0_96] : memref<2x1x64xf32, #tpu.memory_space<vmem>>, vector<1x1x64xf32>
    %224 = vector.shape_cast %223 : vector<1x1x64xf32> to vector<1x64xf32>
    %225 = vector.broadcast %224 : vector<1x64xf32> to vector<16x64xf32>
    %226 = arith.addf %222, %225 : vector<16x64xf32>
    %cst_97 = arith.constant 0.000000e+00 : f32
    %227 = vector.broadcast %cst_97 : f32 to vector<16x64xf32>
    %228 = arith.maximumf %226, %227 : vector<16x64xf32>
    %c1_98 = arith.constant 1 : index
    %c0_99 = arith.constant 0 : index
    %c0_100 = arith.constant 0 : index
    %229 = vector.load %arg10[%c1_98, %c0_99, %c0_100] : memref<2x64x32xf32, #tpu.memory_space<vmem>>, vector<1x64x32xf32>
    %230 = vector.shape_cast %229 : vector<1x64x32xf32> to vector<64x32xf32>
    %cst_101 = arith.constant dense<0.000000e+00> : vector<16x32xf32>
    %231 = tpu.matmul %228, %230, %cst_101 {dimension_numbers = #tpu.dot_dimension_numbers<[1], [0], [0], [1], [0, 0, 1, 1], [], []>} : vector<16x64xf32>, vector<64x32xf32>, vector<16x32xf32> -> vector<16x32xf32>
    %c1_102 = arith.constant 1 : index
    %c0_103 = arith.constant 0 : index
    %c0_104 = arith.constant 0 : index
    %232 = vector.load %arg11[%c1_102, %c0_103, %c0_104] : memref<2x1x32xf32, #tpu.memory_space<vmem>>, vector<1x1x32xf32>
    %233 = vector.shape_cast %232 : vector<1x1x32xf32> to vector<1x32xf32>
    %234 = vector.broadcast %233 : vector<1x32xf32> to vector<16x32xf32>
    %235 = arith.addf %231, %234 : vector<16x32xf32>
    %236 = arith.addf %219, %235 : vector<16x32xf32>
    %c1_105 = arith.constant 1 : index
    %c0_106 = arith.constant 0 : index
    %c0_107 = arith.constant 0 : index
    %237 = vector.load %arg14[%c1_105, %c0_106, %c0_107] : memref<2x1x32xf32, #tpu.memory_space<vmem>>, vector<1x1x32xf32>
    %238 = vector.shape_cast %237 : vector<1x1x32xf32> to vector<1x32xf32>
    %c1_108 = arith.constant 1 : index
    %c0_109 = arith.constant 0 : index
    %c0_110 = arith.constant 0 : index
    %239 = vector.load %arg15[%c1_108, %c0_109, %c0_110] : memref<2x1x32xf32, #tpu.memory_space<vmem>>, vector<1x1x32xf32>
    %240 = vector.shape_cast %239 : vector<1x1x32xf32> to vector<1x32xf32>
    %cst_111 = arith.constant dense<0.000000e+00> : vector<16xf32>
    %241 = vector.multi_reduction <add>, %236, %cst_111 [1] : vector<16x32xf32> to vector<16xf32>
    %242 = vector.shape_cast %241 : vector<16xf32> to vector<16x1xf32>
    %cst_112 = arith.constant 3.200000e+01 : f32
    %243 = vector.broadcast %cst_112 : f32 to vector<16x1xf32>
    %244 = arith.divf %242, %243 : vector<16x1xf32>
    %245 = vector.broadcast %244 : vector<16x1xf32> to vector<16x32xf32>
    %246 = arith.subf %236, %245 : vector<16x32xf32>
    %247 = arith.mulf %246, %246 : vector<16x32xf32>
    %cst_113 = arith.constant dense<0.000000e+00> : vector<16xf32>
    %248 = vector.multi_reduction <add>, %247, %cst_113 [1] : vector<16x32xf32> to vector<16xf32>
    %249 = vector.shape_cast %248 : vector<16xf32> to vector<16x1xf32>
    %cst_114 = arith.constant 3.200000e+01 : f32
    %250 = vector.broadcast %cst_114 : f32 to vector<16x1xf32>
    %251 = arith.divf %249, %250 : vector<16x1xf32>
    %252 = vector.broadcast %244 : vector<16x1xf32> to vector<16x32xf32>
    %253 = arith.subf %236, %252 : vector<16x32xf32>
    %cst_115 = arith.constant 9.99999974E-6 : f32
    %254 = vector.broadcast %cst_115 : f32 to vector<16x1xf32>
    %255 = arith.addf %251, %254 : vector<16x1xf32>
    %256 = math.rsqrt %255 : vector<16x1xf32>
    %257 = vector.broadcast %256 : vector<16x1xf32> to vector<16x32xf32>
    %258 = arith.mulf %253, %257 : vector<16x32xf32>
    %259 = vector.broadcast %238 : vector<1x32xf32> to vector<16x32xf32>
    %260 = arith.mulf %258, %259 : vector<16x32xf32>
    %261 = vector.broadcast %240 : vector<1x32xf32> to vector<16x32xf32>
    %262 = arith.addf %260, %261 : vector<16x32xf32>
    %c0_116 = arith.constant 0 : index
    %c0_117 = arith.constant 0 : index
    %263 = vector.load %arg16[%c0_116, %c0_117] : memref<1x32xf32, #tpu.memory_space<vmem>>, vector<1x32xf32>
    %c0_118 = arith.constant 0 : index
    %c0_119 = arith.constant 0 : index
    %264 = vector.load %arg17[%c0_118, %c0_119] : memref<1x32xf32, #tpu.memory_space<vmem>>, vector<1x32xf32>
    %cst_120 = arith.constant dense<0.000000e+00> : vector<16xf32>
    %265 = vector.multi_reduction <add>, %262, %cst_120 [1] : vector<16x32xf32> to vector<16xf32>
    %266 = vector.shape_cast %265 : vector<16xf32> to vector<16x1xf32>
    %cst_121 = arith.constant 3.200000e+01 : f32
    %267 = vector.broadcast %cst_121 : f32 to vector<16x1xf32>
    %268 = arith.divf %266, %267 : vector<16x1xf32>
    %269 = vector.broadcast %268 : vector<16x1xf32> to vector<16x32xf32>
    %270 = arith.subf %262, %269 : vector<16x32xf32>
    %271 = arith.mulf %270, %270 : vector<16x32xf32>
    %cst_122 = arith.constant dense<0.000000e+00> : vector<16xf32>
    %272 = vector.multi_reduction <add>, %271, %cst_122 [1] : vector<16x32xf32> to vector<16xf32>
    %273 = vector.shape_cast %272 : vector<16xf32> to vector<16x1xf32>
    %cst_123 = arith.constant 3.200000e+01 : f32
    %274 = vector.broadcast %cst_123 : f32 to vector<16x1xf32>
    %275 = arith.divf %273, %274 : vector<16x1xf32>
    %276 = vector.broadcast %268 : vector<16x1xf32> to vector<16x32xf32>
    %277 = arith.subf %262, %276 : vector<16x32xf32>
    %cst_124 = arith.constant 9.99999974E-6 : f32
    %278 = vector.broadcast %cst_124 : f32 to vector<16x1xf32>
    %279 = arith.addf %275, %278 : vector<16x1xf32>
    %280 = math.rsqrt %279 : vector<16x1xf32>
    %281 = vector.broadcast %280 : vector<16x1xf32> to vector<16x32xf32>
    %282 = arith.mulf %277, %281 : vector<16x32xf32>
    %283 = vector.broadcast %263 : vector<1x32xf32> to vector<16x32xf32>
    %284 = arith.mulf %282, %283 : vector<16x32xf32>
    %285 = vector.broadcast %264 : vector<1x32xf32> to vector<16x32xf32>
    %286 = arith.addf %284, %285 : vector<16x32xf32>
    %287 = vector.shape_cast %286 : vector<16x32xf32> to vector<2x8x32xf32>
    %c0_125 = arith.constant 0 : index
    %c0_126 = arith.constant 0 : index
    %c0_127 = arith.constant 0 : index
    %288 = vector.load %arg3[%c0_125, %c0_126, %c0_127] : memref<2x8x1xf32, #tpu.memory_space<vmem>>, vector<2x8x1xf32>
    %289 = vector.broadcast %288 : vector<2x8x1xf32> to vector<2x8x32xf32>
    %290 = arith.mulf %287, %289 : vector<2x8x32xf32>
    %cst_128 = arith.constant dense<0.000000e+00> : vector<2x32xf32>
    %291 = vector.multi_reduction <add>, %290, %cst_128 [1] : vector<2x8x32xf32> to vector<2x32xf32>
    %cst_129 = arith.constant dense<0.000000e+00> : vector<2xf32>
    %292 = vector.multi_reduction <add>, %2, %cst_129 [1] : vector<2x8xf32> to vector<2xf32>
    %293 = vector.shape_cast %292 : vector<2xf32> to vector<2x1xf32>
    %cst_130 = arith.constant 1.000000e+00 : f32
    %294 = vector.broadcast %cst_130 : f32 to vector<2x1xf32>
    %295 = arith.maximumf %293, %294 : vector<2x1xf32>
    %296 = vector.broadcast %295 : vector<2x1xf32> to vector<2x32xf32>
    %297 = arith.divf %291, %296 : vector<2x32xf32>
    %c0_131 = arith.constant 0 : index
    %c0_132 = arith.constant 0 : index
    %298 = vector.load %arg18[%c0_131, %c0_132] : memref<2x32xf32, #tpu.memory_space<vmem>>, vector<2x32xf32>
    tpu.vector_store %arg18[%c0_131, %c0_132], %297 {strides = array<i32>} : memref<2x32xf32, #tpu.memory_space<vmem>>, vector<2x32xf32>,
    return
  }
  func.func @transform_0(%arg0: i32) -> (i32, i32, i32) {
    %c0_i32 = arith.constant 0 : i32
    %c0_i32_0 = arith.constant 0 : i32
    %c0_i32_1 = arith.constant 0 : i32
    %c0_i32_2 = arith.constant 0 : i32
    return %c0_i32, %c0_i32_0, %c0_i32_1 : i32, i32, i32
  }
  func.func @transform_1(%arg0: i32) -> (i32, i32) {
    %c0_i32 = arith.constant 0 : i32
    %c0_i32_0 = arith.constant 0 : i32
    %c0_i32_1 = arith.constant 0 : i32
    return %c0_i32, %c0_i32_0 : i32, i32
  }
  func.func @transform_2(%arg0: i32) -> (i32, i32, i32) {
    %c0_i32 = arith.constant 0 : i32
    %c0_i32_0 = arith.constant 0 : i32
    %c0_i32_1 = arith.constant 0 : i32
    %c0_i32_2 = arith.constant 0 : i32
    return %c0_i32, %c0_i32_0, %c0_i32_1 : i32, i32, i32
  }
  func.func @transform_3(%arg0: i32) -> (i32, i32, i32) {
    %c0_i32 = arith.constant 0 : i32
    %c0_i32_0 = arith.constant 0 : i32
    %c0_i32_1 = arith.constant 0 : i32
    %c0_i32_2 = arith.constant 0 : i32
    return %c0_i32, %c0_i32_0, %c0_i32_1 : i32, i32, i32
  }
  func.func @transform_4(%arg0: i32) -> (i32, i32, i32) {
    %c0_i32 = arith.constant 0 : i32
    %c0_i32_0 = arith.constant 0 : i32
    %c0_i32_1 = arith.constant 0 : i32
    %c0_i32_2 = arith.constant 0 : i32
    return %c0_i32, %c0_i32_0, %c0_i32_1 : i32, i32, i32
  }
  func.func @transform_5(%arg0: i32) -> (i32, i32, i32) {
    %c0_i32 = arith.constant 0 : i32
    %c0_i32_0 = arith.constant 0 : i32
    %c0_i32_1 = arith.constant 0 : i32
    %c0_i32_2 = arith.constant 0 : i32
    return %c0_i32, %c0_i32_0, %c0_i32_1 : i32, i32, i32
  }
  func.func @transform_6(%arg0: i32) -> (i32, i32, i32) {
    %c0_i32 = arith.constant 0 : i32
    %c0_i32_0 = arith.constant 0 : i32
    %c0_i32_1 = arith.constant 0 : i32
    %c0_i32_2 = arith.constant 0 : i32
    return %c0_i32, %c0_i32_0, %c0_i32_1 : i32, i32, i32
  }
  func.func @transform_7(%arg0: i32) -> (i32, i32, i32) {
    %c0_i32 = arith.constant 0 : i32
    %c0_i32_0 = arith.constant 0 : i32
    %c0_i32_1 = arith.constant 0 : i32
    %c0_i32_2 = arith.constant 0 : i32
    return %c0_i32, %c0_i32_0, %c0_i32_1 : i32, i32, i32
  }
  func.func @transform_8(%arg0: i32) -> (i32, i32, i32) {
    %c0_i32 = arith.constant 0 : i32
    %c0_i32_0 = arith.constant 0 : i32
    %c0_i32_1 = arith.constant 0 : i32
    %c0_i32_2 = arith.constant 0 : i32
    return %c0_i32, %c0_i32_0, %c0_i32_1 : i32, i32, i32
  }
  func.func @transform_9(%arg0: i32) -> (i32, i32, i32) {
    %c0_i32 = arith.constant 0 : i32
    %c0_i32_0 = arith.constant 0 : i32
    %c0_i32_1 = arith.constant 0 : i32
    %c0_i32_2 = arith.constant 0 : i32
    return %c0_i32, %c0_i32_0, %c0_i32_1 : i32, i32, i32
  }
  func.func @transform_10(%arg0: i32) -> (i32, i32, i32) {
    %c0_i32 = arith.constant 0 : i32
    %c0_i32_0 = arith.constant 0 : i32
    %c0_i32_1 = arith.constant 0 : i32
    %c0_i32_2 = arith.constant 0 : i32
    return %c0_i32, %c0_i32_0, %c0_i32_1 : i32, i32, i32
  }
  func.func @transform_11(%arg0: i32) -> (i32, i32, i32) {
    %c0_i32 = arith.constant 0 : i32
    %c0_i32_0 = arith.constant 0 : i32
    %c0_i32_1 = arith.constant 0 : i32
    %c0_i32_2 = arith.constant 0 : i32
    return %c0_i32, %c0_i32_0, %c0_i32_1 : i32, i32, i32
  }
  func.func @transform_12(%arg0: i32) -> (i32, i32, i32) {
    %c0_i32 = arith.constant 0 : i32
    %c0_i32_0 = arith.constant 0 : i32
    %c0_i32_1 = arith.constant 0 : i32
    %c0_i32_2 = arith.constant 0 : i32
    return %c0_i32, %c0_i32_0, %c0_i32_1 : i32, i32, i32
  }
  func.func @transform_13(%arg0: i32) -> (i32, i32, i32) {
    %c0_i32 = arith.constant 0 : i32
    %c0_i32_0 = arith.constant 0 : i32
    %c0_i32_1 = arith.constant 0 : i32
    %c0_i32_2 = arith.constant 0 : i32
    return %c0_i32, %c0_i32_0, %c0_i32_1 : i32, i32, i32
  }
  func.func @transform_14(%arg0: i32) -> (i32, i32, i32) {
    %c0_i32 = arith.constant 0 : i32
    %c0_i32_0 = arith.constant 0 : i32
    %c0_i32_1 = arith.constant 0 : i32
    %c0_i32_2 = arith.constant 0 : i32
    return %c0_i32, %c0_i32_0, %c0_i32_1 : i32, i32, i32
  }
  func.func @transform_15(%arg0: i32) -> (i32, i32) {
    %c0_i32 = arith.constant 0 : i32
    %c0_i32_0 = arith.constant 0 : i32
    %c0_i32_1 = arith.constant 0 : i32
    return %c0_i32, %c0_i32_0 : i32, i32
  }
  func.func @transform_16(%arg0: i32) -> (i32, i32) {
    %c0_i32 = arith.constant 0 : i32
    %c0_i32_0 = arith.constant 0 : i32
    %c0_i32_1 = arith.constant 0 : i32
    return %c0_i32, %c0_i32_0 : i32, i32
  }
  func.func @transform_17(%arg0: i32) -> (i32, i32) {
    %c0_i32 = arith.constant 0 : i32
    %c0_i32_0 = arith.constant 0 : i32
    %c0_i32_1 = arith.constant 0 : i32
    return %c0_i32, %c0_i32_0 : i32, i32
  }
}

</mosaic_0001>

<llo_original>
// kernel: encoder_forward.1
$region0: #{encoder_forward.1}
  #allocation0 [shape = 'u32[]', space=smem, size = 0x4, offset = 0x4, fixed_abs, tag = 'smem constant byte address 0x4 - core index']
  #allocation1 [shape = 'u32[72,128]{1,0:T(1,128)}', space=vmem, size = 0x9000, scoped, tag = 'internal scratch']
  %s0 = inlined_call_operand.vmem [shape: f32[2,8,32], index: 0, kind: input, shape index: {}]
  %s1 = inlined_call_operand.vmem [shape: f32[2,8], index: 1, kind: input, shape index: {}]
  %s2 = inlined_call_operand.vmem [shape: f32[2,8,1], index: 2, kind: input, shape index: {}]
  %s3 = inlined_call_operand.vmem [shape: f32[2,32,96], index: 3, kind: input, shape index: {}]
  %s4 = inlined_call_operand.vmem [shape: f32[2,1,96], index: 4, kind: input, shape index: {}]
  %s5 = inlined_call_operand.vmem [shape: f32[2,32,32], index: 5, kind: input, shape index: {}]
  %s6 = inlined_call_operand.vmem [shape: f32[2,1,32], index: 6, kind: input, shape index: {}]
  %s7 = inlined_call_operand.vmem [shape: f32[2,32,64], index: 7, kind: input, shape index: {}]
  %s8 = inlined_call_operand.vmem [shape: f32[2,1,64], index: 8, kind: input, shape index: {}]
  %s9 = inlined_call_operand.vmem [shape: f32[2,64,32], index: 9, kind: input, shape index: {}]
  %s10 = inlined_call_operand.vmem [shape: f32[2,1,32], index: 10, kind: input, shape index: {}]
  %s11 = inlined_call_operand.vmem [shape: f32[2,1,32], index: 11, kind: input, shape index: {}]
  %s12 = inlined_call_operand.vmem [shape: f32[2,1,32], index: 12, kind: input, shape index: {}]
  %s13 = inlined_call_operand.vmem [shape: f32[2,1,32], index: 13, kind: input, shape index: {}]
  %s14 = inlined_call_operand.vmem [shape: f32[2,1,32], index: 14, kind: input, shape index: {}]
  %s15 = inlined_call_operand.vmem [shape: f32[1,32], index: 15, kind: input, shape index: {}]
  %s16 = inlined_call_operand.vmem [shape: f32[1,32], index: 16, kind: input, shape index: {}]
  %s17 = inlined_call_operand.hbm [shape: f32[2,32], index: 17, kind: output, shape index: {}]
  %s18 = sld [smem:[#allocation0]]
  $region78: #{encoder_forward.1} parent=0
    _
  %s20 = ssub.s32 1, %s18
  %s21 = scalar_select 0, %s20, %s18
  $region1: #{encoder_forward.1} parent=0
    #allocation2 [shape = 'u8[1024]{0}', space=vmem, size = 0x400, scoped, tag = 'output window, operand 0, single buffered']
    #allocation3 [shape = 's32[1]{0}', space=sflag, size = 0x4, scoped, tag = 'scoped memory for encoder_forward.1']
    %22 = vsyncpa [#allocation3], 0
    // Predicated region
    $region2: #{encoder_forward.1} parent=1 // pred_check
      _
    $region3: #{encoder_forward.1} parent=1 // pred_check_branch
      %24 = sbr.rel (0) target = $region5
    $region4: #{encoder_forward.1} parent=1 // pred_region
      _
    $region5: #{encoder_forward.1} parent=1 // pred_fallthru
      _
    // Predicated region
    $region6: #{encoder_forward.1} parent=1 // pred_check
      _
    $region7: #{encoder_forward.1} parent=1 // pred_check_branch
      %26 = sbr.rel (0) target = $region9
    $region8: #{encoder_forward.1} parent=1 // pred_region
      _
    $region9: #{encoder_forward.1} parent=1 // pred_fallthru
      _
    // Predicated region
    $region10: #{encoder_forward.1} parent=1 // pred_check
      _
    $region11: #{encoder_forward.1} parent=1 // pred_check_branch
      %28 = sbr.rel (0) target = $region13
    $region12: #{encoder_forward.1} parent=1 // pred_region
      _
    $region13: #{encoder_forward.1} parent=1 // pred_fallthru
      _
    // Predicated region
    $region14: #{encoder_forward.1} parent=1 // pred_check
      _
    $region15: #{encoder_forward.1} parent=1 // pred_check_branch
      %30 = sbr.rel (0) target = $region17
    $region16: #{encoder_forward.1} parent=1 // pred_region
      _
    $region17: #{encoder_forward.1} parent=1 // pred_fallthru
      _
    // Predicated region
    $region18: #{encoder_forward.1} parent=1 // pred_check
      _
    $region19: #{encoder_forward.1} parent=1 // pred_check_branch
      %32 = sbr.rel (0) target = $region21
    $region20: #{encoder_forward.1} parent=1 // pred_region
      _
    $region21: #{encoder_forward.1} parent=1 // pred_fallthru
      _
    // Predicated region
    $region22: #{encoder_forward.1} parent=1 // pred_check
      _
    $region23: #{encoder_forward.1} parent=1 // pred_check_branch
      %34 = sbr.rel (0) target = $region25
    $region24: #{encoder_forward.1} parent=1 // pred_region
      _
    $region25: #{encoder_forward.1} parent=1 // pred_fallthru
      _
    // Predicated region
    $region26: #{encoder_forward.1} parent=1 // pred_check
      _
    $region27: #{encoder_forward.1} parent=1 // pred_check_branch
      %36 = sbr.rel (0) target = $region29
    $region28: #{encoder_forward.1} parent=1 // pred_region
      _
    $region29: #{encoder_forward.1} parent=1 // pred_fallthru
      _
    // Predicated region
    $region30: #{encoder_forward.1} parent=1 // pred_check
      _
    $region31: #{encoder_forward.1} parent=1 // pred_check_branch
      %38 = sbr.rel (0) target = $region33
    $region32: #{encoder_forward.1} parent=1 // pred_region
      _
    $region33: #{encoder_forward.1} parent=1 // pred_fallthru
      _
    // Predicated region
    $region34: #{encoder_forward.1} parent=1 // pred_check
      _
    $region35: #{encoder_forward.1} parent=1 // pred_check_branch
      %40 = sbr.rel (0) target = $region37
    $region36: #{encoder_forward.1} parent=1 // pred_region
      _
    $region37: #{encoder_forward.1} parent=1 // pred_fallthru
      _
    // Predicated region
    $region38: #{encoder_forward.1} parent=1 // pred_check
      _
    $region39: #{encoder_forward.1} parent=1 // pred_check_branch
      %42 = sbr.rel (0) target = $region41
    $region40: #{encoder_forward.1} parent=1 // pred_region
      _
    $region41: #{encoder_forward.1} parent=1 // pred_fallthru
      _
    // Predicated region
    $region42: #{encoder_forward.1} parent=1 // pred_check
      _
    $region43: #{encoder_forward.1} parent=1 // pred_check_branch
      %44 = sbr.rel (0) target = $region45
    $region44: #{encoder_forward.1} parent=1 // pred_region
      _
    $region45: #{encoder_forward.1} parent=1 // pred_fallthru
      _
    // Predicated region
    $region46: #{encoder_forward.1} parent=1 // pred_check
      _
    $region47: #{encoder_forward.1} parent=1 // pred_check_branch
      %46 = sbr.rel (0) target = $region49
    $region48: #{encoder_forward.1} parent=1 // pred_region
      _
    $region49: #{encoder_forward.1} parent=1 // pred_fallthru
      _
    // Predicated region
    $region50: #{encoder_forward.1} parent=1 // pred_check
      _
    $region51: #{encoder_forward.1} parent=1 // pred_check_branch
      %48 = sbr.rel (0) target = $region53
    $region52: #{encoder_forward.1} parent=1 // pred_region
      _
    $region53: #{encoder_forward.1} parent=1 // pred_fallthru
      _
    // Predicated region
    $region54: #{encoder_forward.1} parent=1 // pred_check
      _
    $region55: #{encoder_forward.1} parent=1 // pred_check_branch
      %50 = sbr.rel (0) target = $region57
    $region56: #{encoder_forward.1} parent=1 // pred_region
      _
    $region57: #{encoder_forward.1} parent=1 // pred_fallthru
      _
    // Predicated region
    $region58: #{encoder_forward.1} parent=1 // pred_check
      _
    $region59: #{encoder_forward.1} parent=1 // pred_check_branch
      %52 = sbr.rel (0) target = $region61
    $region60: #{encoder_forward.1} parent=1 // pred_region
      _
    $region61: #{encoder_forward.1} parent=1 // pred_fallthru
      _
    // Predicated region
    $region62: #{encoder_forward.1} parent=1 // pred_check
      _
    $region63: #{encoder_forward.1} parent=1 // pred_check_branch
      %54 = sbr.rel (0) target = $region65
    $region64: #{encoder_forward.1} parent=1 // pred_region
      _
    $region65: #{encoder_forward.1} parent=1 // pred_fallthru
      _
    // Predicated region
    $region66: #{encoder_forward.1} parent=1 // pred_check
      _
    $region67: #{encoder_forward.1} parent=1 // pred_check_branch
      %56 = sbr.rel (0) target = $region69
    $region68: #{encoder_forward.1} parent=1 // pred_region
      _
    $region69: #{encoder_forward.1} parent=1 // pred_fallthru
      _
    %v57 = vld [vmem:[%s0] sm:$0xff]
    %v58 = vld [vmem:[%s0 + $0x8] sm:$0xff]
    %v59 = vld [vmem:[%s1] sm:$0x3]
    %v60 = vsub.f32 1.0, %v59
    %v61 = vmul.f32 %v60, -1e+30
    %v63 = vrot.slane %v61, 1
    %v64 = vld [vmem:[%s3] sm:$0xff]
    %v65 = vld [vmem:[%s3 + $0x8] sm:$0xff]
    %v66 = vld [vmem:[%s3 + $0x10] sm:$0xff]
    %v67 = vld [vmem:[%s3 + $0x18] sm:$0xff]
    %v68 = vld [vmem:[%s4] sm:$0x1]
    %v70 = vperm.slane %v68, 0
    %vm72 = vcmask 261120
    %v74 = vsel %vm72, %v57, 0
    %v77 = vsel %vm72, %v58, 0
    %79 = vmatpush.msra.mxu0 0.0
    %80 = vmatpush.msra.mxu0 0.0
    %81 = vmatpush.msra.mxu0 0.0
    %82 = vmatpush.msra.mxu0 0.0
    %83 = vmatpush.msra.mxu0 0.0
    %84 = vmatpush.msra.mxu0 0.0
    %85 = vmatpush.msra.mxu0 0.0
    %86 = vmatpush.msra.mxu0 0.0
    %87 = vmatpush.msra.mxu0 0.0
    %88 = vmatpush.msra.mxu0 0.0
    %89 = vmatpush.msra.mxu0 0.0
    %90 = vmatpush.msra.mxu0 0.0
    %91 = vmatpush.msra.mxu0 %v67
    %92 = vmatpush.msra.mxu0 %v66
    %93 = vmatpush.msra.mxu0 %v65
    %94 = vmatpush.msra.mxu0 %v64
    %95 = vmatmul.f32.gmra.mxu0 %v74
    %v96 = vpop.f32.mrf.mxu0
    %v97 = vadd.f32 %v70, %v96
    %98 = vmatmul.f32.gmra.mxu0 %v77
    %v99 = vpop.f32.mrf.mxu0
    %v100 = vadd.f32 %v70, %v99
    %101 = vdwg.mxu0
    %104 = vrot.lane.b32.xlu0 %v97, 120
    %v105 = vpop.permute.xlu0 %104
    %106 = vrot.lane.b32.xlu0 %v100, 120
    %v107 = vpop.permute.xlu0 %106
    %110 = vrot.lane.b32.xlu0 %v97, 112
    %v111 = vpop.permute.xlu0 %110
    %112 = vrot.lane.b32.xlu0 %v100, 112
    %v113 = vpop.permute.xlu0 %112
    %116 = vrot.lane.b32.xlu0 %v97, 104
    %v117 = vpop.permute.xlu0 %116
    %118 = vrot.lane.b32.xlu0 %v100, 104
    %v119 = vpop.permute.xlu0 %118
    %v122 = vmul.f32 %v97, 0.35355338
    %v123 = vmul.f32 %v100, 0.35355338
    %v124 = vmul.f32 %v105, 0.35355338
    %v125 = vmul.f32 %v107, 0.35355338
    %v126 = vmul.f32 %v111, 0.35355338
    %v127 = vmul.f32 %v113, 0.35355338
    %v128 = vmul.f32 %v117, 0.35355338
    %v129 = vmul.f32 %v119, 0.35355338
    %v130 = vperm.slane %v61, 0
    %v131 = vperm.slane %v63, 0
    %134 = vrot.lane.b32.xlu0 %v97, 96
    %v135 = vpop.permute.xlu0 %134
    %vm136 = vcmask 64512
    %v138 = vsel %vm136, %v122, 0
    %v140 = vsel %vm136, %v135, 0
    %142 = vmatpush.xpose.msra.mxu0 0.0
    %143 = vmatpush.xpose.msra.mxu0 0.0
    %144 = vmatpush.xpose.msra.mxu0 0.0
    %145 = vmatpush.xpose.msra.mxu0 0.0
    %146 = vmatpush.xpose.msra.mxu0 0.0
    %147 = vmatpush.xpose.msra.mxu0 0.0
    %148 = vmatpush.xpose.msra.mxu0 0.0
    %149 = vmatpush.xpose.msra.mxu0 0.0
    %150 = vmatpush.xpose.msra.mxu0 0.0
    %151 = vmatpush.xpose.msra.mxu0 0.0
    %152 = vmatpush.xpose.msra.mxu0 0.0
    %153 = vmatpush.xpose.msra.mxu0 0.0
    %154 = vmatpush.xpose.msra.mxu0 0.0
    %155 = vmatpush.xpose.msra.mxu0 0.0
    %156 = vmatpush.xpose.msra.mxu0 0.0
    %157 = vmatpush.xpose.msra.mxu0 %v140
    %158 = vmatmul.f32.gmra.mxu0 %v138
    %v159 = vpop.f32.mrf.mxu0
    %v160 = vadd.f32 %v130, %v159
    %161 = vdwg.mxu0
    %162 = vrot.lane.b32.xlu0 %v100, 96
    %v163 = vpop.permute.xlu0 %162
    %v165 = vsel %vm136, %v123, 0
    %v167 = vsel %vm136, %v163, 0
    %169 = vmatpush.xpose.msra.mxu0 0.0
    %170 = vmatpush.xpose.msra.mxu0 0.0
    %171 = vmatpush.xpose.msra.mxu0 0.0
    %172 = vmatpush.xpose.msra.mxu0 0.0
    %173 = vmatpush.xpose.msra.mxu0 0.0
    %174 = vmatpush.xpose.msra.mxu0 0.0
    %175 = vmatpush.xpose.msra.mxu0 0.0
    %176 = vmatpush.xpose.msra.mxu0 0.0
    %177 = vmatpush.xpose.msra.mxu0 0.0
    %178 = vmatpush.xpose.msra.mxu0 0.0
    %179 = vmatpush.xpose.msra.mxu0 0.0
    %180 = vmatpush.xpose.msra.mxu0 0.0
    %181 = vmatpush.xpose.msra.mxu0 0.0
    %182 = vmatpush.xpose.msra.mxu0 0.0
    %183 = vmatpush.xpose.msra.mxu0 0.0
    %184 = vmatpush.xpose.msra.mxu0 %v167
    %185 = vmatmul.f32.gmra.mxu0 %v165
    %v186 = vpop.f32.mrf.mxu0
    %v187 = vadd.f32 %v131, %v186
    %188 = vdwg.mxu0
    %189 = vrot.lane.b32.xlu0 %v105, 96
    %v190 = vpop.permute.xlu0 %189
    %v192 = vsel %vm136, %v124, 0
    %v194 = vsel %vm136, %v190, 0
    %196 = vmatpush.xpose.msra.mxu0 0.0
    %197 = vmatpush.xpose.msra.mxu0 0.0
    %198 = vmatpush.xpose.msra.mxu0 0.0
    %199 = vmatpush.xpose.msra.mxu0 0.0
    %200 = vmatpush.xpose.msra.mxu0 0.0
    %201 = vmatpush.xpose.msra.mxu0 0.0
    %202 = vmatpush.xpose.msra.mxu0 0.0
    %203 = vmatpush.xpose.msra.mxu0 0.0
    %204 = vmatpush.xpose.msra.mxu0 0.0
    %205 = vmatpush.xpose.msra.mxu0 0.0
    %206 = vmatpush.xpose.msra.mxu0 0.0
    %207 = vmatpush.xpose.msra.mxu0 0.0
    %208 = vmatpush.xpose.msra.mxu0 0.0
    %209 = vmatpush.xpose.msra.mxu0 0.0
    %210 = vmatpush.xpose.msra.mxu0 0.0
    %211 = vmatpush.xpose.msra.mxu0 %v194
    %212 = vmatmul.f32.gmra.mxu0 %v192
    %v213 = vpop.f32.mrf.mxu0
    %v214 = vadd.f32 %v130, %v213
    %215 = vdwg.mxu0
    %216 = vrot.lane.b32.xlu0 %v107, 96
    %v217 = vpop.permute.xlu0 %216
    %v219 = vsel %vm136, %v125, 0
    %v221 = vsel %vm136, %v217, 0
    %223 = vmatpush.xpose.msra.mxu0 0.0
    %224 = vmatpush.xpose.msra.mxu0 0.0
    %225 = vmatpush.xpose.msra.mxu0 0.0
    %226 = vmatpush.xpose.msra.mxu0 0.0
    %227 = vmatpush.xpose.msra.mxu0 0.0
    %228 = vmatpush.xpose.msra.mxu0 0.0
    %229 = vmatpush.xpose.msra.mxu0 0.0
    %230 = vmatpush.xpose.msra.mxu0 0.0
    %231 = vmatpush.xpose.msra.mxu0 0.0
    %232 = vmatpush.xpose.msra.mxu0 0.0
    %233 = vmatpush.xpose.msra.mxu0 0.0
    %234 = vmatpush.xpose.msra.mxu0 0.0
    %235 = vmatpush.xpose.msra.mxu0 0.0
    %236 = vmatpush.xpose.msra.mxu0 0.0
    %237 = vmatpush.xpose.msra.mxu0 0.0
    %238 = vmatpush.xpose.msra.mxu0 %v221
    %239 = vmatmul.f32.gmra.mxu0 %v219
    %v240 = vpop.f32.mrf.mxu0
    %v241 = vadd.f32 %v131, %v240
    %242 = vdwg.mxu0
    %243 = vrot.lane.b32.xlu0 %v111, 96
    %v244 = vpop.permute.xlu0 %243
    %v246 = vsel %vm136, %v126, 0
    %v248 = vsel %vm136, %v244, 0
    %250 = vmatpush.xpose.msra.mxu0 0.0
    %251 = vmatpush.xpose.msra.mxu0 0.0
    %252 = vmatpush.xpose.msra.mxu0 0.0
    %253 = vmatpush.xpose.msra.mxu0 0.0
    %254 = vmatpush.xpose.msra.mxu0 0.0
    %255 = vmatpush.xpose.msra.mxu0 0.0
    %256 = vmatpush.xpose.msra.mxu0 0.0
    %257 = vmatpush.xpose.msra.mxu0 0.0
    %258 = vmatpush.xpose.msra.mxu0 0.0
    %259 = vmatpush.xpose.msra.mxu0 0.0
    %260 = vmatpush.xpose.msra.mxu0 0.0
    %261 = vmatpush.xpose.msra.mxu0 0.0
    %262 = vmatpush.xpose.msra.mxu0 0.0
    %263 = vmatpush.xpose.msra.mxu0 0.0
    %264 = vmatpush.xpose.msra.mxu0 0.0
    %265 = vmatpush.xpose.msra.mxu0 %v248
    %266 = vmatmul.f32.gmra.mxu0 %v246
    %v267 = vpop.f32.mrf.mxu0
    %v268 = vadd.f32 %v130, %v267
    %269 = vdwg.mxu0
    %270 = vrot.lane.b32.xlu0 %v113, 96
    %v271 = vpop.permute.xlu0 %270
    %v273 = vsel %vm136, %v127, 0
    %v275 = vsel %vm136, %v271, 0
    %277 = vmatpush.xpose.msra.mxu0 0.0
    %278 = vmatpush.xpose.msra.mxu0 0.0
    %279 = vmatpush.xpose.msra.mxu0 0.0
    %280 = vmatpush.xpose.msra.mxu0 0.0
    %281 = vmatpush.xpose.msra.mxu0 0.0
    %282 = vmatpush.xpose.msra.mxu0 0.0
    %283 = vmatpush.xpose.msra.mxu0 0.0
    %284 = vmatpush.xpose.msra.mxu0 0.0
    %285 = vmatpush.xpose.msra.mxu0 0.0
    %286 = vmatpush.xpose.msra.mxu0 0.0
    %287 = vmatpush.xpose.msra.mxu0 0.0
    %288 = vmatpush.xpose.msra.mxu0 0.0
    %289 = vmatpush.xpose.msra.mxu0 0.0
    %290 = vmatpush.xpose.msra.mxu0 0.0
    %291 = vmatpush.xpose.msra.mxu0 0.0
    %292 = vmatpush.xpose.msra.mxu0 %v275
    %293 = vmatmul.f32.gmra.mxu0 %v273
    %v294 = vpop.f32.mrf.mxu0
    %v295 = vadd.f32 %v131, %v294
    %296 = vdwg.mxu0
    %297 = vrot.lane.b32.xlu0 %v117, 96
    %v298 = vpop.permute.xlu0 %297
    %v300 = vsel %vm136, %v128, 0
    %v302 = vsel %vm136, %v298, 0
    %304 = vmatpush.xpose.msra.mxu0 0.0
    %305 = vmatpush.xpose.msra.mxu0 0.0
    %306 = vmatpush.xpose.msra.mxu0 0.0
    %307 = vmatpush.xpose.msra.mxu0 0.0
    %308 = vmatpush.xpose.msra.mxu0 0.0
    %309 = vmatpush.xpose.msra.mxu0 0.0
    %310 = vmatpush.xpose.msra.mxu0 0.0
    %311 = vmatpush.xpose.msra.mxu0 0.0
    %312 = vmatpush.xpose.msra.mxu0 0.0
    %313 = vmatpush.xpose.msra.mxu0 0.0
    %314 = vmatpush.xpose.msra.mxu0 0.0
    %315 = vmatpush.xpose.msra.mxu0 0.0
    %316 = vmatpush.xpose.msra.mxu0 0.0
    %317 = vmatpush.xpose.msra.mxu0 0.0
    %318 = vmatpush.xpose.msra.mxu0 0.0
    %319 = vmatpush.xpose.msra.mxu0 %v302
    %320 = vmatmul.f32.gmra.mxu0 %v300
    %v321 = vpop.f32.mrf.mxu0
    %v322 = vadd.f32 %v130, %v321
    %323 = vdwg.mxu0
    %324 = vrot.lane.b32.xlu0 %v119, 96
    %v325 = vpop.permute.xlu0 %324
    %v327 = vsel %vm136, %v129, 0
    %v329 = vsel %vm136, %v325, 0
    %331 = vmatpush.xpose.msra.mxu0 0.0
    %332 = vmatpush.xpose.msra.mxu0 0.0
    %333 = vmatpush.xpose.msra.mxu0 0.0
    %334 = vmatpush.xpose.msra.mxu0 0.0
    %335 = vmatpush.xpose.msra.mxu0 0.0
    %336 = vmatpush.xpose.msra.mxu0 0.0
    %337 = vmatpush.xpose.msra.mxu0 0.0
    %338 = vmatpush.xpose.msra.mxu0 0.0
    %339 = vmatpush.xpose.msra.mxu0 0.0
    %340 = vmatpush.xpose.msra.mxu0 0.0
    %341 = vmatpush.xpose.msra.mxu0 0.0
    %342 = vmatpush.xpose.msra.mxu0 0.0
    %343 = vmatpush.xpose.msra.mxu0 0.0
    %344 = vmatpush.xpose.msra.mxu0 0.0
    %345 = vmatpush.xpose.msra.mxu0 0.0
    %346 = vmatpush.xpose.msra.mxu0 %v329
    %347 = vmatmul.f32.gmra.mxu0 %v327
    %v348 = vpop.f32.mrf.mxu0
    %v349 = vadd.f32 %v131, %v348
    %350 = vdwg.mxu0
    %v351 = vsel %vm136, %v160, -inf
    %352 = vmax.xlane.f32.xlu0 %v351
    %v353 = vpop.xlane.xlu0 %352
    %v354 = vsel %vm136, %v187, -inf
    %355 = vmax.xlane.f32.xlu0 %v354
    %v356 = vpop.xlane.xlu0 %355
    %v357 = vsel %vm136, %v214, -inf
    %358 = vmax.xlane.f32.xlu0 %v357
    %v359 = vpop.xlane.xlu0 %358
    %v360 = vsel %vm136, %v241, -inf
    %361 = vmax.xlane.f32.xlu0 %v360
    %v362 = vpop.xlane.xlu0 %361
    %v363 = vsel %vm136, %v268, -inf
    %364 = vmax.xlane.f32.xlu0 %v363
    %v365 = vpop.xlane.xlu0 %364
    %v366 = vsel %vm136, %v295, -inf
    %367 = vmax.xlane.f32.xlu0 %v366
    %v368 = vpop.xlane.xlu0 %367
    %v369 = vsel %vm136, %v322, -inf
    %370 = vmax.xlane.f32.xlu0 %v369
    %v371 = vpop.xlane.xlu0 %370
    %v372 = vsel %vm136, %v349, -inf
    %373 = vmax.xlane.f32.xlu0 %v372
    %v374 = vpop.xlane.xlu0 %373
    %v375 = vsub.f32 %v160, %v353
    %v376 = vsub.f32 %v187, %v356
    %v377 = vsub.f32 %v214, %v359
    %v378 = vsub.f32 %v241, %v362
    %v379 = vsub.f32 %v268, %v365
    %v380 = vsub.f32 %v295, %v368
    %v381 = vsub.f32 %v322, %v371
    %v382 = vsub.f32 %v349, %v374
    %v383 = vmul.f32 %v375, 1.442695
    %v384 = vpow.pop %v383
    %v385 = vmul.f32 %v376, 1.442695
    %v386 = vpow.pop %v385
    %v387 = vmul.f32 %v377, 1.442695
    %v388 = vpow.pop %v387
    %v389 = vmul.f32 %v378, 1.442695
    %v390 = vpow.pop %v389
    %v391 = vmul.f32 %v379, 1.442695
    %v392 = vpow.pop %v391
    %v393 = vmul.f32 %v380, 1.442695
    %v394 = vpow.pop %v393
    %v395 = vmul.f32 %v381, 1.442695
    %v396 = vpow.pop %v395
    %v397 = vmul.f32 %v382, 1.442695
    %v398 = vpow.pop %v397
    %v399 = vsel %vm136, %v384, 0.0
    %400 = vadd.xlane.f32.xlu0 %v399
    %v401 = vpop.xlane.xlu0 %400
    %v402 = vsel %vm136, %v386, 0.0
    %403 = vadd.xlane.f32.xlu0 %v402
    %v404 = vpop.xlane.xlu0 %403
    %v405 = vsel %vm136, %v388, 0.0
    %406 = vadd.xlane.f32.xlu0 %v405
    %v407 = vpop.xlane.xlu0 %406
    %v408 = vsel %vm136, %v390, 0.0
    %409 = vadd.xlane.f32.xlu0 %v408
    %v410 = vpop.xlane.xlu0 %409
    %v411 = vsel %vm136, %v392, 0.0
    %412 = vadd.xlane.f32.xlu0 %v411
    %v413 = vpop.xlane.xlu0 %412
    %v414 = vsel %vm136, %v394, 0.0
    %415 = vadd.xlane.f32.xlu0 %v414
    %v416 = vpop.xlane.xlu0 %415
    %v417 = vsel %vm136, %v396, 0.0
    %418 = vadd.xlane.f32.xlu0 %v417
    %v419 = vpop.xlane.xlu0 %418
    %v420 = vsel %vm136, %v398, 0.0
    %421 = vadd.xlane.f32.xlu0 %v420
    %v422 = vpop.xlane.xlu0 %421
    %v423 = vrcp.pop %v401
    %v424 = vrcp.pop %v404
    %v425 = vrcp.pop %v407
    %v426 = vrcp.pop %v410
    %v427 = vrcp.pop %v413
    %v428 = vrcp.pop %v416
    %v429 = vrcp.pop %v419
    %v430 = vrcp.pop %v422
    %v431 = vmul.f32 %v384, %v423
    %v432 = vmul.f32 %v386, %v424
    %v433 = vmul.f32 %v388, %v425
    %v434 = vmul.f32 %v390, %v426
    %v435 = vmul.f32 %v392, %v427
    %v436 = vmul.f32 %v394, %v428
    %v437 = vmul.f32 %v396, %v429
    %v438 = vmul.f32 %v398, %v430
    %439 = vrot.lane.b32.xlu0 %v97, 64
    %v440 = vpop.permute.xlu0 %439
    %v443 = vsel %vm136, %v431, 0
    %445 = vmatpush.msra.mxu0 0.0
    %446 = vmatpush.msra.mxu0 0.0
    %447 = vmatpush.msra.mxu0 0.0
    %448 = vmatpush.msra.mxu0 0.0
    %449 = vmatpush.msra.mxu0 0.0
    %450 = vmatpush.msra.mxu0 0.0
    %451 = vmatpush.msra.mxu0 0.0
    %452 = vmatpush.msra.mxu0 0.0
    %453 = vmatpush.msra.mxu0 0.0
    %454 = vmatpush.msra.mxu0 0.0
    %455 = vmatpush.msra.mxu0 0.0
    %456 = vmatpush.msra.mxu0 0.0
    %457 = vmatpush.msra.mxu0 0.0
    %458 = vmatpush.msra.mxu0 0.0
    %459 = vmatpush.msra.mxu0 0.0
    %460 = vmatpush.msra.mxu0 %v440
    %461 = vmatmul.f32.gmra.mxu0 %v443
    %v462 = vpop.f32.mrf.mxu0
    %v463 = vadd.f32 0.0, %v462
    %464 = vdwg.mxu0
    %465 = vrot.lane.b32.xlu0 %v100, 64
    %v466 = vpop.permute.xlu0 %465
    %v469 = vsel %vm136, %v432, 0
    %471 = vmatpush.msra.mxu0 0.0
    %472 = vmatpush.msra.mxu0 0.0
    %473 = vmatpush.msra.mxu0 0.0
    %474 = vmatpush.msra.mxu0 0.0
    %475 = vmatpush.msra.mxu0 0.0
    %476 = vmatpush.msra.mxu0 0.0
    %477 = vmatpush.msra.mxu0 0.0
    %478 = vmatpush.msra.mxu0 0.0
    %479 = vmatpush.msra.mxu0 0.0
    %480 = vmatpush.msra.mxu0 0.0
    %481 = vmatpush.msra.mxu0 0.0
    %482 = vmatpush.msra.mxu0 0.0
    %483 = vmatpush.msra.mxu0 0.0
    %484 = vmatpush.msra.mxu0 0.0
    %485 = vmatpush.msra.mxu0 0.0
    %486 = vmatpush.msra.mxu0 %v466
    %487 = vmatmul.f32.gmra.mxu0 %v469
    %v488 = vpop.f32.mrf.mxu0
    %v489 = vadd.f32 0.0, %v488
    %490 = vdwg.mxu0
    %491 = vrot.lane.b32.xlu0 %v105, 64
    %v492 = vpop.permute.xlu0 %491
    %v495 = vsel %vm136, %v433, 0
    %497 = vmatpush.msra.mxu0 0.0
    %498 = vmatpush.msra.mxu0 0.0
    %499 = vmatpush.msra.mxu0 0.0
    %500 = vmatpush.msra.mxu0 0.0
    %501 = vmatpush.msra.mxu0 0.0
    %502 = vmatpush.msra.mxu0 0.0
    %503 = vmatpush.msra.mxu0 0.0
    %504 = vmatpush.msra.mxu0 0.0
    %505 = vmatpush.msra.mxu0 0.0
    %506 = vmatpush.msra.mxu0 0.0
    %507 = vmatpush.msra.mxu0 0.0
    %508 = vmatpush.msra.mxu0 0.0
    %509 = vmatpush.msra.mxu0 0.0
    %510 = vmatpush.msra.mxu0 0.0
    %511 = vmatpush.msra.mxu0 0.0
    %512 = vmatpush.msra.mxu0 %v492
    %513 = vmatmul.f32.gmra.mxu0 %v495
    %v514 = vpop.f32.mrf.mxu0
    %v515 = vadd.f32 0.0, %v514
    %516 = vdwg.mxu0
    %517 = vrot.lane.b32.xlu0 %v107, 64
    %v518 = vpop.permute.xlu0 %517
    %v521 = vsel %vm136, %v434, 0
    %523 = vmatpush.msra.mxu0 0.0
    %524 = vmatpush.msra.mxu0 0.0
    %525 = vmatpush.msra.mxu0 0.0
    %526 = vmatpush.msra.mxu0 0.0
    %527 = vmatpush.msra.mxu0 0.0
    %528 = vmatpush.msra.mxu0 0.0
    %529 = vmatpush.msra.mxu0 0.0
    %530 = vmatpush.msra.mxu0 0.0
    %531 = vmatpush.msra.mxu0 0.0
    %532 = vmatpush.msra.mxu0 0.0
    %533 = vmatpush.msra.mxu0 0.0
    %534 = vmatpush.msra.mxu0 0.0
    %535 = vmatpush.msra.mxu0 0.0
    %536 = vmatpush.msra.mxu0 0.0
    %537 = vmatpush.msra.mxu0 0.0
    %538 = vmatpush.msra.mxu0 %v518
    %539 = vmatmul.f32.gmra.mxu0 %v521
    %v540 = vpop.f32.mrf.mxu0
    %v541 = vadd.f32 0.0, %v540
    %542 = vdwg.mxu0
    %543 = vrot.lane.b32.xlu0 %v111, 64
    %v544 = vpop.permute.xlu0 %543
    %v547 = vsel %vm136, %v435, 0
    %549 = vmatpush.msra.mxu0 0.0
    %550 = vmatpush.msra.mxu0 0.0
    %551 = vmatpush.msra.mxu0 0.0
    %552 = vmatpush.msra.mxu0 0.0
    %553 = vmatpush.msra.mxu0 0.0
    %554 = vmatpush.msra.mxu0 0.0
    %555 = vmatpush.msra.mxu0 0.0
    %556 = vmatpush.msra.mxu0 0.0
    %557 = vmatpush.msra.mxu0 0.0
    %558 = vmatpush.msra.mxu0 0.0
    %559 = vmatpush.msra.mxu0 0.0
    %560 = vmatpush.msra.mxu0 0.0
    %561 = vmatpush.msra.mxu0 0.0
    %562 = vmatpush.msra.mxu0 0.0
    %563 = vmatpush.msra.mxu0 0.0
    %564 = vmatpush.msra.mxu0 %v544
    %565 = vmatmul.f32.gmra.mxu0 %v547
    %v566 = vpop.f32.mrf.mxu0
    %v567 = vadd.f32 0.0, %v566
    %568 = vdwg.mxu0
    %569 = vrot.lane.b32.xlu0 %v113, 64
    %v570 = vpop.permute.xlu0 %569
    %v573 = vsel %vm136, %v436, 0
    %575 = vmatpush.msra.mxu0 0.0
    %576 = vmatpush.msra.mxu0 0.0
    %577 = vmatpush.msra.mxu0 0.0
    %578 = vmatpush.msra.mxu0 0.0
    %579 = vmatpush.msra.mxu0 0.0
    %580 = vmatpush.msra.mxu0 0.0
    %581 = vmatpush.msra.mxu0 0.0
    %582 = vmatpush.msra.mxu0 0.0
    %583 = vmatpush.msra.mxu0 0.0
    %584 = vmatpush.msra.mxu0 0.0
    %585 = vmatpush.msra.mxu0 0.0
    %586 = vmatpush.msra.mxu0 0.0
    %587 = vmatpush.msra.mxu0 0.0
    %588 = vmatpush.msra.mxu0 0.0
    %589 = vmatpush.msra.mxu0 0.0
    %590 = vmatpush.msra.mxu0 %v570
    %591 = vmatmul.f32.gmra.mxu0 %v573
    %v592 = vpop.f32.mrf.mxu0
    %v593 = vadd.f32 0.0, %v592
    %594 = vdwg.mxu0
    %595 = vrot.lane.b32.xlu0 %v117, 64
    %v596 = vpop.permute.xlu0 %595
    %v599 = vsel %vm136, %v437, 0
    %601 = vmatpush.msra.mxu0 0.0
    %602 = vmatpush.msra.mxu0 0.0
    %603 = vmatpush.msra.mxu0 0.0
    %604 = vmatpush.msra.mxu0 0.0
    %605 = vmatpush.msra.mxu0 0.0
    %606 = vmatpush.msra.mxu0 0.0
    %607 = vmatpush.msra.mxu0 0.0
    %608 = vmatpush.msra.mxu0 0.0
    %609 = vmatpush.msra.mxu0 0.0
    %610 = vmatpush.msra.mxu0 0.0
    %611 = vmatpush.msra.mxu0 0.0
    %612 = vmatpush.msra.mxu0 0.0
    %613 = vmatpush.msra.mxu0 0.0
    %614 = vmatpush.msra.mxu0 0.0
    %615 = vmatpush.msra.mxu0 0.0
    %616 = vmatpush.msra.mxu0 %v596
    %617 = vmatmul.f32.gmra.mxu0 %v599
    %v618 = vpop.f32.mrf.mxu0
    %v619 = vadd.f32 0.0, %v618
    %620 = vdwg.mxu0
    %621 = vrot.lane.b32.xlu0 %v119, 64
    %v622 = vpop.permute.xlu0 %621
    %v625 = vsel %vm136, %v438, 0
    %627 = vmatpush.msra.mxu0 0.0
    %628 = vmatpush.msra.mxu0 0.0
    %629 = vmatpush.msra.mxu0 0.0
    %630 = vmatpush.msra.mxu0 0.0
    %631 = vmatpush.msra.mxu0 0.0
    %632 = vmatpush.msra.mxu0 0.0
    %633 = vmatpush.msra.mxu0 0.0
    %634 = vmatpush.msra.mxu0 0.0
    %635 = vmatpush.msra.mxu0 0.0
    %636 = vmatpush.msra.mxu0 0.0
    %637 = vmatpush.msra.mxu0 0.0
    %638 = vmatpush.msra.mxu0 0.0
    %639 = vmatpush.msra.mxu0 0.0
    %640 = vmatpush.msra.mxu0 0.0
    %641 = vmatpush.msra.mxu0 0.0
    %642 = vmatpush.msra.mxu0 %v622
    %643 = vmatmul.f32.gmra.mxu0 %v625
    %v644 = vpop.f32.mrf.mxu0
    %v645 = vadd.f32 0.0, %v644
    %646 = vdwg.mxu0
    %649 = vrot.lane.b32.xlu0 %v515, 8
    %v650 = vpop.permute.xlu0 %649
    %651 = vrot.lane.b32.xlu0 %v541, 8
    %v652 = vpop.permute.xlu0 %651
    %657 = vrot.lane.b32.xlu0 %v567, 16
    %v658 = vpop.permute.xlu0 %657
    %659 = vrot.lane.b32.xlu0 %v593, 16
    %v660 = vpop.permute.xlu0 %659
    %665 = vrot.lane.b32.xlu0 %v619, 24
    %v666 = vpop.permute.xlu0 %665
    %667 = vrot.lane.b32.xlu0 %v645, 24
    %v668 = vpop.permute.xlu0 %667
    %v671 = vsel %vm136, %v463, %v650
    %v672 = vsel %vm136, %v489, %v652
    %vm673 = vcmask 130048
    %v674 = vsel %vm673, %v671, %v658
    %v675 = vsel %vm673, %v672, %v660
    %vm676 = vcmask 195584
    %v677 = vsel %vm676, %v674, %v666
    %v678 = vsel %vm676, %v675, %v668
    %v679 = vld [vmem:[%s5] sm:$0xff]
    %v680 = vld [vmem:[%s5 + $0x8] sm:$0xff]
    %v681 = vld [vmem:[%s5 + $0x10] sm:$0xff]
    %v682 = vld [vmem:[%s5 + $0x18] sm:$0xff]
    %v683 = vld [vmem:[%s6] sm:$0x1]
    %v685 = vperm.slane %v683, 0
    %v688 = vsel %vm72, %v677, 0
    %v691 = vsel %vm72, %v678, 0
    %693 = vmatpush.msra.mxu0 0.0
    %694 = vmatpush.msra.mxu0 0.0
    %695 = vmatpush.msra.mxu0 0.0
    %696 = vmatpush.msra.mxu0 0.0
    %697 = vmatpush.msra.mxu0 0.0
    %698 = vmatpush.msra.mxu0 0.0
    %699 = vmatpush.msra.mxu0 0.0
    %700 = vmatpush.msra.mxu0 0.0
    %701 = vmatpush.msra.mxu0 0.0
    %702 = vmatpush.msra.mxu0 0.0
    %703 = vmatpush.msra.mxu0 0.0
    %704 = vmatpush.msra.mxu0 0.0
    %705 = vmatpush.msra.mxu0 %v682
    %706 = vmatpush.msra.mxu0 %v681
    %707 = vmatpush.msra.mxu0 %v680
    %708 = vmatpush.msra.mxu0 %v679
    %709 = vmatmul.f32.gmra.mxu0 %v688
    %v710 = vpop.f32.mrf.mxu0
    %v711 = vadd.f32 %v685, %v710
    %712 = vmatmul.f32.gmra.mxu0 %v691
    %v713 = vpop.f32.mrf.mxu0
    %v714 = vadd.f32 %v685, %v713
    %715 = vdwg.mxu0
    %v716 = vadd.f32 %v57, %v711
    %v717 = vadd.f32 %v58, %v714
    %v718 = vld [vmem:[%s11] sm:$0x1]
    %v719 = vld [vmem:[%s12] sm:$0x1]
    %v720 = vsel %vm72, %v716, 0.0
    %721 = vadd.xlane.f32.xlu0 %v720
    %v722 = vpop.xlane.xlu0 %721
    %v723 = vsel %vm72, %v717, 0.0
    %724 = vadd.xlane.f32.xlu0 %v723
    %v725 = vpop.xlane.xlu0 %724
    %v726 = vrcp.pop 32.0
    %v727 = vmul.f32 32.0, %v726
    %v728 = vsub.f32 1.0, %v727
    %v729 = vmul.f32 %v726, %v728
    %v730 = vadd.f32 %v726, %v729
    %vm731 = vweird.f32 %v726
    %v732 = vsel %vm731, %v726, %v730
    %v733 = vmul.f32 %v722, %v732
    %v734 = vmul.f32 %v725, %v732
    %v735 = vsub.f32 %v716, %v733
    %v736 = vsub.f32 %v717, %v734
    %v737 = vmul.f32 %v735, %v735
    %v738 = vmul.f32 %v736, %v736
    %v739 = vsel %vm72, %v737, 0.0
    %740 = vadd.xlane.f32.xlu0 %v739
    %v741 = vpop.xlane.xlu0 %740
    %v742 = vsel %vm72, %v738, 0.0
    %743 = vadd.xlane.f32.xlu0 %v742
    %v744 = vpop.xlane.xlu0 %743
    %v745 = vmul.f32 %v741, %v732
    %v746 = vmul.f32 %v744, %v732
    %v747 = vadd.f32 %v745, 1e-05
    %v748 = vadd.f32 %v746, 1e-05
    %v749 = vrsqrt.pop %v747
    %v750 = vmul.f32 %v749, %v747
    %v751 = vmul.f32 %v750, %v749
    %v752 = vmul.f32 0.5, %v751
    %v753 = vsub.f32 1.5, %v752
    %v754 = vmul.f32 %v749, %v753
    %vm755 = vweird.f32 %v747
    %vm756 = vweird.f32 %v749
    %vm757 = vmor %vm755, %vm756
    %v758 = vsel %vm757, %v749, %v754
    %v759 = vrsqrt.pop %v748
    %v760 = vmul.f32 %v759, %v748
    %v761 = vmul.f32 %v760, %v759
    %v762 = vmul.f32 0.5, %v761
    %v763 = vsub.f32 1.5, %v762
    %v764 = vmul.f32 %v759, %v763
    %vm765 = vweird.f32 %v748
    %vm766 = vweird.f32 %v759
    %vm767 = vmor %vm765, %vm766
    %v768 = vsel %vm767, %v759, %v764
    %v769 = vmul.f32 %v735, %v758
    %v770 = vmul.f32 %v736, %v768
    %v772 = vperm.slane %v718, 0
    %v774 = vmul.f32 %v769, %v772
    %v775 = vmul.f32 %v770, %v772
    %v777 = vperm.slane %v719, 0
    %v779 = vadd.f32 %v774, %v777
    %v780 = vadd.f32 %v775, %v777
    %v781 = vld [vmem:[%s7] sm:$0xff]
    %v782 = vld [vmem:[%s7 + $0x8] sm:$0xff]
    %v783 = vld [vmem:[%s7 + $0x10] sm:$0xff]
    %v784 = vld [vmem:[%s7 + $0x18] sm:$0xff]
    %v785 = vld [vmem:[%s8] sm:$0x1]
    %v787 = vperm.slane %v785, 0
    %v790 = vsel %vm72, %v779, 0
    %v793 = vsel %vm72, %v780, 0
    %795 = vmatpush.msra.mxu0 0.0
    %796 = vmatpush.msra.mxu0 0.0
    %797 = vmatpush.msra.mxu0 0.0
    %798 = vmatpush.msra.mxu0 0.0
    %799 = vmatpush.msra.mxu0 0.0
    %800 = vmatpush.msra.mxu0 0.0
    %801 = vmatpush.msra.mxu0 0.0
    %802 = vmatpush.msra.mxu0 0.0
    %803 = vmatpush.msra.mxu0 0.0
    %804 = vmatpush.msra.mxu0 0.0
    %805 = vmatpush.msra.mxu0 0.0
    %806 = vmatpush.msra.mxu0 0.0
    %807 = vmatpush.msra.mxu0 %v784
    %808 = vmatpush.msra.mxu0 %v783
    %809 = vmatpush.msra.mxu0 %v782
    %810 = vmatpush.msra.mxu0 %v781
    %811 = vmatmul.f32.gmra.mxu0 %v790
    %v812 = vpop.f32.mrf.mxu0
    %v813 = vadd.f32 %v787, %v812
    %814 = vmatmul.f32.gmra.mxu0 %v793
    %v815 = vpop.f32.mrf.mxu0
    %v816 = vadd.f32 %v787, %v815
    %817 = vdwg.mxu0
    %v818 = vmax.f32 %v813, 0.0
    %v819 = vmax.f32 %v816, 0.0
    %v820 = vld [vmem:[%s9] sm:$0xff]
    %v821 = vld [vmem:[%s9 + $0x8] sm:$0xff]
    %v822 = vld [vmem:[%s9 + $0x10] sm:$0xff]
    %v823 = vld [vmem:[%s9 + $0x18] sm:$0xff]
    %v824 = vld [vmem:[%s9 + $0x20] sm:$0xff]
    %v825 = vld [vmem:[%s9 + $0x28] sm:$0xff]
    %v826 = vld [vmem:[%s9 + $0x30] sm:$0xff]
    %v827 = vld [vmem:[%s9 + $0x38] sm:$0xff]
    %v828 = vld [vmem:[%s10] sm:$0x1]
    %v830 = vperm.slane %v828, 0
    %vm832 = vcmask 523264
    %v834 = vsel %vm832, %v818, 0
    %v837 = vsel %vm832, %v819, 0
    %839 = vmatpush.msra.mxu0 0.0
    %840 = vmatpush.msra.mxu0 0.0
    %841 = vmatpush.msra.mxu0 0.0
    %842 = vmatpush.msra.mxu0 0.0
    %843 = vmatpush.msra.mxu0 0.0
    %844 = vmatpush.msra.mxu0 0.0
    %845 = vmatpush.msra.mxu0 0.0
    %846 = vmatpush.msra.mxu0 0.0
    %847 = vmatpush.msra.mxu0 %v827
    %848 = vmatpush.msra.mxu0 %v826
    %849 = vmatpush.msra.mxu0 %v825
    %850 = vmatpush.msra.mxu0 %v824
    %851 = vmatpush.msra.mxu0 %v823
    %852 = vmatpush.msra.mxu0 %v822
    %853 = vmatpush.msra.mxu0 %v821
    %854 = vmatpush.msra.mxu0 %v820
    %855 = vmatmul.f32.gmra.mxu0 %v834
    %v856 = vpop.f32.mrf.mxu0
    %v857 = vadd.f32 %v830, %v856
    %858 = vmatmul.f32.gmra.mxu0 %v837
    %v859 = vpop.f32.mrf.mxu0
    %v860 = vadd.f32 %v830, %v859
    %861 = vdwg.mxu0
    %v862 = vadd.f32 %v779, %v857
    %v863 = vadd.f32 %v780, %v860
    %v864 = vld [vmem:[%s13] sm:$0x1]
    %v865 = vld [vmem:[%s14] sm:$0x1]
    %v866 = vsel %vm72, %v862, 0.0
    %867 = vadd.xlane.f32.xlu0 %v866
    %v868 = vpop.xlane.xlu0 %867
    %v869 = vsel %vm72, %v863, 0.0
    %870 = vadd.xlane.f32.xlu0 %v869
    %v871 = vpop.xlane.xlu0 %870
    %v872 = vmul.f32 %v868, %v732
    %v873 = vmul.f32 %v871, %v732
    %v874 = vsub.f32 %v862, %v872
    %v875 = vsub.f32 %v863, %v873
    %v876 = vmul.f32 %v874, %v874
    %v877 = vmul.f32 %v875, %v875
    %v878 = vsel %vm72, %v876, 0.0
    %879 = vadd.xlane.f32.xlu0 %v878
    %v880 = vpop.xlane.xlu0 %879
    %v881 = vsel %vm72, %v877, 0.0
    %882 = vadd.xlane.f32.xlu0 %v881
    %v883 = vpop.xlane.xlu0 %882
    %v884 = vmul.f32 %v880, %v732
    %v885 = vmul.f32 %v883, %v732
    %v886 = vadd.f32 %v884, 1e-05
    %v887 = vadd.f32 %v885, 1e-05
    %v888 = vrsqrt.pop %v886
    %v889 = vmul.f32 %v888, %v886
    %v890 = vmul.f32 %v889, %v888
    %v891 = vmul.f32 0.5, %v890
    %v892 = vsub.f32 1.5, %v891
    %v893 = vmul.f32 %v888, %v892
    %vm894 = vweird.f32 %v886
    %vm895 = vweird.f32 %v888
    %vm896 = vmor %vm894, %vm895
    %v897 = vsel %vm896, %v888, %v893
    %v898 = vrsqrt.pop %v887
    %v899 = vmul.f32 %v898, %v887
    %v900 = vmul.f32 %v899, %v898
    %v901 = vmul.f32 0.5, %v900
    %v902 = vsub.f32 1.5, %v901
    %v903 = vmul.f32 %v898, %v902
    %vm904 = vweird.f32 %v887
    %vm905 = vweird.f32 %v898
    %vm906 = vmor %vm904, %vm905
    %v907 = vsel %vm906, %v898, %v903
    %v908 = vmul.f32 %v874, %v897
    %v909 = vmul.f32 %v875, %v907
    %v911 = vperm.slane %v864, 0
    %v913 = vmul.f32 %v908, %v911
    %v914 = vmul.f32 %v909, %v911
    %v916 = vperm.slane %v865, 0
    %v918 = vadd.f32 %v913, %v916
    %v919 = vadd.f32 %v914, %v916
    %s920 = scalar_lea.vmem %s3, 32
    %v921 = vld [vmem:[%s920] sm:$0xff]
    %v922 = vld [vmem:[%s920 + $0x8] sm:$0xff]
    %v923 = vld [vmem:[%s920 + $0x10] sm:$0xff]
    %v924 = vld [vmem:[%s920 + $0x18] sm:$0xff]
    %s925 = scalar_lea.vmem %s4, 1
    %v926 = vld [vmem:[%s925] sm:$0x1]
    %v928 = vperm.slane %v926, 0
    %v931 = vsel %vm72, %v918, 0
    %v934 = vsel %vm72, %v919, 0
    %936 = vmatpush.msra.mxu0 0.0
    %937 = vmatpush.msra.mxu0 0.0
    %938 = vmatpush.msra.mxu0 0.0
    %939 = vmatpush.msra.mxu0 0.0
    %940 = vmatpush.msra.mxu0 0.0
    %941 = vmatpush.msra.mxu0 0.0
    %942 = vmatpush.msra.mxu0 0.0
    %943 = vmatpush.msra.mxu0 0.0
    %944 = vmatpush.msra.mxu0 0.0
    %945 = vmatpush.msra.mxu0 0.0
    %946 = vmatpush.msra.mxu0 0.0
    %947 = vmatpush.msra.mxu0 0.0
    %948 = vmatpush.msra.mxu0 %v924
    %949 = vmatpush.msra.mxu0 %v923
    %950 = vmatpush.msra.mxu0 %v922
    %951 = vmatpush.msra.mxu0 %v921
    %952 = vmatmul.f32.gmra.mxu0 %v931
    %v953 = vpop.f32.mrf.mxu0
    %v954 = vadd.f32 %v928, %v953
    %955 = vmatmul.f32.gmra.mxu0 %v934
    %v956 = vpop.f32.mrf.mxu0
    %v957 = vadd.f32 %v928, %v956
    %958 = vdwg.mxu0
    %961 = vrot.lane.b32.xlu0 %v954, 120
    %v962 = vpop.permute.xlu0 %961
    %963 = vrot.lane.b32.xlu0 %v957, 120
    %v964 = vpop.permute.xlu0 %963
    %967 = vrot.lane.b32.xlu0 %v954, 112
    %v968 = vpop.permute.xlu0 %967
    %969 = vrot.lane.b32.xlu0 %v957, 112
    %v970 = vpop.permute.xlu0 %969
    %973 = vrot.lane.b32.xlu0 %v954, 104
    %v974 = vpop.permute.xlu0 %973
    %975 = vrot.lane.b32.xlu0 %v957, 104
    %v976 = vpop.permute.xlu0 %975
    %v979 = vmul.f32 %v954, 0.35355338
    %v980 = vmul.f32 %v957, 0.35355338
    %v981 = vmul.f32 %v962, 0.35355338
    %v982 = vmul.f32 %v964, 0.35355338
    %v983 = vmul.f32 %v968, 0.35355338
    %v984 = vmul.f32 %v970, 0.35355338
    %v985 = vmul.f32 %v974, 0.35355338
    %v986 = vmul.f32 %v976, 0.35355338
    %987 = vrot.lane.b32.xlu0 %v954, 96
    %v988 = vpop.permute.xlu0 %987
    %v990 = vsel %vm136, %v979, 0
    %v992 = vsel %vm136, %v988, 0
    %994 = vmatpush.xpose.msra.mxu0 0.0
    %995 = vmatpush.xpose.msra.mxu0 0.0
    %996 = vmatpush.xpose.msra.mxu0 0.0
    %997 = vmatpush.xpose.msra.mxu0 0.0
    %998 = vmatpush.xpose.msra.mxu0 0.0
    %999 = vmatpush.xpose.msra.mxu0 0.0
    %1000 = vmatpush.xpose.msra.mxu0 0.0
    %1001 = vmatpush.xpose.msra.mxu0 0.0
    %1002 = vmatpush.xpose.msra.mxu0 0.0
    %1003 = vmatpush.xpose.msra.mxu0 0.0
    %1004 = vmatpush.xpose.msra.mxu0 0.0
    %1005 = vmatpush.xpose.msra.mxu0 0.0
    %1006 = vmatpush.xpose.msra.mxu0 0.0
    %1007 = vmatpush.xpose.msra.mxu0 0.0
    %1008 = vmatpush.xpose.msra.mxu0 0.0
    %1009 = vmatpush.xpose.msra.mxu0 %v992
    %1010 = vmatmul.f32.gmra.mxu0 %v990
    %v1011 = vpop.f32.mrf.mxu0
    %v1012 = vadd.f32 %v130, %v1011
    %1013 = vdwg.mxu0
    %1014 = vrot.lane.b32.xlu0 %v957, 96
    %v1015 = vpop.permute.xlu0 %1014
    %v1017 = vsel %vm136, %v980, 0
    %v1019 = vsel %vm136, %v1015, 0
    %1021 = vmatpush.xpose.msra.mxu0 0.0
    %1022 = vmatpush.xpose.msra.mxu0 0.0
    %1023 = vmatpush.xpose.msra.mxu0 0.0
    %1024 = vmatpush.xpose.msra.mxu0 0.0
    %1025 = vmatpush.xpose.msra.mxu0 0.0
    %1026 = vmatpush.xpose.msra.mxu0 0.0
    %1027 = vmatpush.xpose.msra.mxu0 0.0
    %1028 = vmatpush.xpose.msra.mxu0 0.0
    %1029 = vmatpush.xpose.msra.mxu0 0.0
    %1030 = vmatpush.xpose.msra.mxu0 0.0
    %1031 = vmatpush.xpose.msra.mxu0 0.0
    %1032 = vmatpush.xpose.msra.mxu0 0.0
    %1033 = vmatpush.xpose.msra.mxu0 0.0
    %1034 = vmatpush.xpose.msra.mxu0 0.0
    %1035 = vmatpush.xpose.msra.mxu0 0.0
    %1036 = vmatpush.xpose.msra.mxu0 %v1019
    %1037 = vmatmul.f32.gmra.mxu0 %v1017
    %v1038 = vpop.f32.mrf.mxu0
    %v1039 = vadd.f32 %v131, %v1038
    %1040 = vdwg.mxu0
    %1041 = vrot.lane.b32.xlu0 %v962, 96
    %v1042 = vpop.permute.xlu0 %1041
    %v1044 = vsel %vm136, %v981, 0
    %v1046 = vsel %vm136, %v1042, 0
    %1048 = vmatpush.xpose.msra.mxu0 0.0
    %1049 = vmatpush.xpose.msra.mxu0 0.0
    %1050 = vmatpush.xpose.msra.mxu0 0.0
    %1051 = vmatpush.xpose.msra.mxu0 0.0
    %1052 = vmatpush.xpose.msra.mxu0 0.0
    %1053 = vmatpush.xpose.msra.mxu0 0.0
    %1054 = vmatpush.xpose.msra.mxu0 0.0
    %1055 = vmatpush.xpose.msra.mxu0 0.0
    %1056 = vmatpush.xpose.msra.mxu0 0.0
    %1057 = vmatpush.xpose.msra.mxu0 0.0
    %1058 = vmatpush.xpose.msra.mxu0 0.0
    %1059 = vmatpush.xpose.msra.mxu0 0.0
    %1060 = vmatpush.xpose.msra.mxu0 0.0
    %1061 = vmatpush.xpose.msra.mxu0 0.0
    %1062 = vmatpush.xpose.msra.mxu0 0.0
    %1063 = vmatpush.xpose.msra.mxu0 %v1046
    %1064 = vmatmul.f32.gmra.mxu0 %v1044
    %v1065 = vpop.f32.mrf.mxu0
    %v1066 = vadd.f32 %v130, %v1065
    %1067 = vdwg.mxu0
    %1068 = vrot.lane.b32.xlu0 %v964, 96
    %v1069 = vpop.permute.xlu0 %1068
    %v1071 = vsel %vm136, %v982, 0
    %v1073 = vsel %vm136, %v1069, 0
    %1075 = vmatpush.xpose.msra.mxu0 0.0
    %1076 = vmatpush.xpose.msra.mxu0 0.0
    %1077 = vmatpush.xpose.msra.mxu0 0.0
    %1078 = vmatpush.xpose.msra.mxu0 0.0
    %1079 = vmatpush.xpose.msra.mxu0 0.0
    %1080 = vmatpush.xpose.msra.mxu0 0.0
    %1081 = vmatpush.xpose.msra.mxu0 0.0
    %1082 = vmatpush.xpose.msra.mxu0 0.0
    %1083 = vmatpush.xpose.msra.mxu0 0.0
    %1084 = vmatpush.xpose.msra.mxu0 0.0
    %1085 = vmatpush.xpose.msra.mxu0 0.0
    %1086 = vmatpush.xpose.msra.mxu0 0.0
    %1087 = vmatpush.xpose.msra.mxu0 0.0
    %1088 = vmatpush.xpose.msra.mxu0 0.0
    %1089 = vmatpush.xpose.msra.mxu0 0.0
    %1090 = vmatpush.xpose.msra.mxu0 %v1073
    %1091 = vmatmul.f32.gmra.mxu0 %v1071
    %v1092 = vpop.f32.mrf.mxu0
    %v1093 = vadd.f32 %v131, %v1092
    %1094 = vdwg.mxu0
    %1095 = vrot.lane.b32.xlu0 %v968, 96
    %v1096 = vpop.permute.xlu0 %1095
    %v1098 = vsel %vm136, %v983, 0
    %v1100 = vsel %vm136, %v1096, 0
    %1102 = vmatpush.xpose.msra.mxu0 0.0
    %1103 = vmatpush.xpose.msra.mxu0 0.0
    %1104 = vmatpush.xpose.msra.mxu0 0.0
    %1105 = vmatpush.xpose.msra.mxu0 0.0
    %1106 = vmatpush.xpose.msra.mxu0 0.0
    %1107 = vmatpush.xpose.msra.mxu0 0.0
    %1108 = vmatpush.xpose.msra.mxu0 0.0
    %1109 = vmatpush.xpose.msra.mxu0 0.0
    %1110 = vmatpush.xpose.msra.mxu0 0.0
    %1111 = vmatpush.xpose.msra.mxu0 0.0
    %1112 = vmatpush.xpose.msra.mxu0 0.0
    %1113 = vmatpush.xpose.msra.mxu0 0.0
    %1114 = vmatpush.xpose.msra.mxu0 0.0
    %1115 = vmatpush.xpose.msra.mxu0 0.0
    %1116 = vmatpush.xpose.msra.mxu0 0.0
    %1117 = vmatpush.xpose.msra.mxu0 %v1100
    %1118 = vmatmul.f32.gmra.mxu0 %v1098
    %v1119 = vpop.f32.mrf.mxu0
    %v1120 = vadd.f32 %v130, %v1119
    %1121 = vdwg.mxu0
    %1122 = vrot.lane.b32.xlu0 %v970, 96
    %v1123 = vpop.permute.xlu0 %1122
    %v1125 = vsel %vm136, %v984, 0
    %v1127 = vsel %vm136, %v1123, 0
    %1129 = vmatpush.xpose.msra.mxu0 0.0
    %1130 = vmatpush.xpose.msra.mxu0 0.0
    %1131 = vmatpush.xpose.msra.mxu0 0.0
    %1132 = vmatpush.xpose.msra.mxu0 0.0
    %1133 = vmatpush.xpose.msra.mxu0 0.0
    %1134 = vmatpush.xpose.msra.mxu0 0.0
    %1135 = vmatpush.xpose.msra.mxu0 0.0
    %1136 = vmatpush.xpose.msra.mxu0 0.0
    %1137 = vmatpush.xpose.msra.mxu0 0.0
    %1138 = vmatpush.xpose.msra.mxu0 0.0
    %1139 = vmatpush.xpose.msra.mxu0 0.0
    %1140 = vmatpush.xpose.msra.mxu0 0.0
    %1141 = vmatpush.xpose.msra.mxu0 0.0
    %1142 = vmatpush.xpose.msra.mxu0 0.0
    %1143 = vmatpush.xpose.msra.mxu0 0.0
    %1144 = vmatpush.xpose.msra.mxu0 %v1127
    %1145 = vmatmul.f32.gmra.mxu0 %v1125
    %v1146 = vpop.f32.mrf.mxu0
    %v1147 = vadd.f32 %v131, %v1146
    %1148 = vdwg.mxu0
    %1149 = vrot.lane.b32.xlu0 %v974, 96
    %v1150 = vpop.permute.xlu0 %1149
    %v1152 = vsel %vm136, %v985, 0
    %v1154 = vsel %vm136, %v1150, 0
    %1156 = vmatpush.xpose.msra.mxu0 0.0
    %1157 = vmatpush.xpose.msra.mxu0 0.0
    %1158 = vmatpush.xpose.msra.mxu0 0.0
    %1159 = vmatpush.xpose.msra.mxu0 0.0
    %1160 = vmatpush.xpose.msra.mxu0 0.0
    %1161 = vmatpush.xpose.msra.mxu0 0.0
    %1162 = vmatpush.xpose.msra.mxu0 0.0
    %1163 = vmatpush.xpose.msra.mxu0 0.0
    %1164 = vmatpush.xpose.msra.mxu0 0.0
    %1165 = vmatpush.xpose.msra.mxu0 0.0
    %1166 = vmatpush.xpose.msra.mxu0 0.0
    %1167 = vmatpush.xpose.msra.mxu0 0.0
    %1168 = vmatpush.xpose.msra.mxu0 0.0
    %1169 = vmatpush.xpose.msra.mxu0 0.0
    %1170 = vmatpush.xpose.msra.mxu0 0.0
    %1171 = vmatpush.xpose.msra.mxu0 %v1154
    %1172 = vmatmul.f32.gmra.mxu0 %v1152
    %v1173 = vpop.f32.mrf.mxu0
    %v1174 = vadd.f32 %v130, %v1173
    %1175 = vdwg.mxu0
    %1176 = vrot.lane.b32.xlu0 %v976, 96
    %v1177 = vpop.permute.xlu0 %1176
    %v1179 = vsel %vm136, %v986, 0
    %v1181 = vsel %vm136, %v1177, 0
    %1183 = vmatpush.xpose.msra.mxu0 0.0
    %1184 = vmatpush.xpose.msra.mxu0 0.0
    %1185 = vmatpush.xpose.msra.mxu0 0.0
    %1186 = vmatpush.xpose.msra.mxu0 0.0
    %1187 = vmatpush.xpose.msra.mxu0 0.0
    %1188 = vmatpush.xpose.msra.mxu0 0.0
    %1189 = vmatpush.xpose.msra.mxu0 0.0
    %1190 = vmatpush.xpose.msra.mxu0 0.0
    %1191 = vmatpush.xpose.msra.mxu0 0.0
    %1192 = vmatpush.xpose.msra.mxu0 0.0
    %1193 = vmatpush.xpose.msra.mxu0 0.0
    %1194 = vmatpush.xpose.msra.mxu0 0.0
    %1195 = vmatpush.xpose.msra.mxu0 0.0
    %1196 = vmatpush.xpose.msra.mxu0 0.0
    %1197 = vmatpush.xpose.msra.mxu0 0.0
    %1198 = vmatpush.xpose.msra.mxu0 %v1181
    %1199 = vmatmul.f32.gmra.mxu0 %v1179
    %v1200 = vpop.f32.mrf.mxu0
    %v1201 = vadd.f32 %v131, %v1200
    %1202 = vdwg.mxu0
    %v1203 = vsel %vm136, %v1012, -inf
    %1204 = vmax.xlane.f32.xlu0 %v1203
    %v1205 = vpop.xlane.xlu0 %1204
    %v1206 = vsel %vm136, %v1039, -inf
    %1207 = vmax.xlane.f32.xlu0 %v1206
    %v1208 = vpop.xlane.xlu0 %1207
    %v1209 = vsel %vm136, %v1066, -inf
    %1210 = vmax.xlane.f32.xlu0 %v1209
    %v1211 = vpop.xlane.xlu0 %1210
    %v1212 = vsel %vm136, %v1093, -inf
    %1213 = vmax.xlane.f32.xlu0 %v1212
    %v1214 = vpop.xlane.xlu0 %1213
    %v1215 = vsel %vm136, %v1120, -inf
    %1216 = vmax.xlane.f32.xlu0 %v1215
    %v1217 = vpop.xlane.xlu0 %1216
    %v1218 = vsel %vm136, %v1147, -inf
    %1219 = vmax.xlane.f32.xlu0 %v1218
    %v1220 = vpop.xlane.xlu0 %1219
    %v1221 = vsel %vm136, %v1174, -inf
    %1222 = vmax.xlane.f32.xlu0 %v1221
    %v1223 = vpop.xlane.xlu0 %1222
    %v1224 = vsel %vm136, %v1201, -inf
    %1225 = vmax.xlane.f32.xlu0 %v1224
    %v1226 = vpop.xlane.xlu0 %1225
    %v1227 = vsub.f32 %v1012, %v1205
    %v1228 = vsub.f32 %v1039, %v1208
    %v1229 = vsub.f32 %v1066, %v1211
    %v1230 = vsub.f32 %v1093, %v1214
    %v1231 = vsub.f32 %v1120, %v1217
    %v1232 = vsub.f32 %v1147, %v1220
    %v1233 = vsub.f32 %v1174, %v1223
    %v1234 = vsub.f32 %v1201, %v1226
    %v1235 = vmul.f32 %v1227, 1.442695
    %v1236 = vpow.pop %v1235
    %v1237 = vmul.f32 %v1228, 1.442695
    %v1238 = vpow.pop %v1237
    %v1239 = vmul.f32 %v1229, 1.442695
    %v1240 = vpow.pop %v1239
    %v1241 = vmul.f32 %v1230, 1.442695
    %v1242 = vpow.pop %v1241
    %v1243 = vmul.f32 %v1231, 1.442695
    %v1244 = vpow.pop %v1243
    %v1245 = vmul.f32 %v1232, 1.442695
    %v1246 = vpow.pop %v1245
    %v1247 = vmul.f32 %v1233, 1.442695
    %v1248 = vpow.pop %v1247
    %v1249 = vmul.f32 %v1234, 1.442695
    %v1250 = vpow.pop %v1249
    %v1251 = vsel %vm136, %v1236, 0.0
    %1252 = vadd.xlane.f32.xlu0 %v1251
    %v1253 = vpop.xlane.xlu0 %1252
    %v1254 = vsel %vm136, %v1238, 0.0
    %1255 = vadd.xlane.f32.xlu0 %v1254
    %v1256 = vpop.xlane.xlu0 %1255
    %v1257 = vsel %vm136, %v1240, 0.0
    %1258 = vadd.xlane.f32.xlu0 %v1257
    %v1259 = vpop.xlane.xlu0 %1258
    %v1260 = vsel %vm136, %v1242, 0.0
    %1261 = vadd.xlane.f32.xlu0 %v1260
    %v1262 = vpop.xlane.xlu0 %1261
    %v1263 = vsel %vm136, %v1244, 0.0
    %1264 = vadd.xlane.f32.xlu0 %v1263
    %v1265 = vpop.xlane.xlu0 %1264
    %v1266 = vsel %vm136, %v1246, 0.0
    %1267 = vadd.xlane.f32.xlu0 %v1266
    %v1268 = vpop.xlane.xlu0 %1267
    %v1269 = vsel %vm136, %v1248, 0.0
    %1270 = vadd.xlane.f32.xlu0 %v1269
    %v1271 = vpop.xlane.xlu0 %1270
    %v1272 = vsel %vm136, %v1250, 0.0
    %1273 = vadd.xlane.f32.xlu0 %v1272
    %v1274 = vpop.xlane.xlu0 %1273
    %v1275 = vrcp.pop %v1253
    %v1276 = vrcp.pop %v1256
    %v1277 = vrcp.pop %v1259
    %v1278 = vrcp.pop %v1262
    %v1279 = vrcp.pop %v1265
    %v1280 = vrcp.pop %v1268
    %v1281 = vrcp.pop %v1271
    %v1282 = vrcp.pop %v1274
    %v1283 = vmul.f32 %v1236, %v1275
    %v1284 = vmul.f32 %v1238, %v1276
    %v1285 = vmul.f32 %v1240, %v1277
    %v1286 = vmul.f32 %v1242, %v1278
    %v1287 = vmul.f32 %v1244, %v1279
    %v1288 = vmul.f32 %v1246, %v1280
    %v1289 = vmul.f32 %v1248, %v1281
    %v1290 = vmul.f32 %v1250, %v1282
    %1291 = vrot.lane.b32.xlu0 %v954, 64
    %v1292 = vpop.permute.xlu0 %1291
    %v1295 = vsel %vm136, %v1283, 0
    %1297 = vmatpush.msra.mxu0 0.0
    %1298 = vmatpush.msra.mxu0 0.0
    %1299 = vmatpush.msra.mxu0 0.0
    %1300 = vmatpush.msra.mxu0 0.0
    %1301 = vmatpush.msra.mxu0 0.0
    %1302 = vmatpush.msra.mxu0 0.0
    %1303 = vmatpush.msra.mxu0 0.0
    %1304 = vmatpush.msra.mxu0 0.0
    %1305 = vmatpush.msra.mxu0 0.0
    %1306 = vmatpush.msra.mxu0 0.0
    %1307 = vmatpush.msra.mxu0 0.0
    %1308 = vmatpush.msra.mxu0 0.0
    %1309 = vmatpush.msra.mxu0 0.0
    %1310 = vmatpush.msra.mxu0 0.0
    %1311 = vmatpush.msra.mxu0 0.0
    %1312 = vmatpush.msra.mxu0 %v1292
    %1313 = vmatmul.f32.gmra.mxu0 %v1295
    %v1314 = vpop.f32.mrf.mxu0
    %v1315 = vadd.f32 0.0, %v1314
    %1316 = vdwg.mxu0
    %1317 = vrot.lane.b32.xlu0 %v957, 64
    %v1318 = vpop.permute.xlu0 %1317
    %v1321 = vsel %vm136, %v1284, 0
    %1323 = vmatpush.msra.mxu0 0.0
    %1324 = vmatpush.msra.mxu0 0.0
    %1325 = vmatpush.msra.mxu0 0.0
    %1326 = vmatpush.msra.mxu0 0.0
    %1327 = vmatpush.msra.mxu0 0.0
    %1328 = vmatpush.msra.mxu0 0.0
    %1329 = vmatpush.msra.mxu0 0.0
    %1330 = vmatpush.msra.mxu0 0.0
    %1331 = vmatpush.msra.mxu0 0.0
    %1332 = vmatpush.msra.mxu0 0.0
    %1333 = vmatpush.msra.mxu0 0.0
    %1334 = vmatpush.msra.mxu0 0.0
    %1335 = vmatpush.msra.mxu0 0.0
    %1336 = vmatpush.msra.mxu0 0.0
    %1337 = vmatpush.msra.mxu0 0.0
    %1338 = vmatpush.msra.mxu0 %v1318
    %1339 = vmatmul.f32.gmra.mxu0 %v1321
    %v1340 = vpop.f32.mrf.mxu0
    %v1341 = vadd.f32 0.0, %v1340
    %1342 = vdwg.mxu0
    %1343 = vrot.lane.b32.xlu0 %v962, 64
    %v1344 = vpop.permute.xlu0 %1343
    %v1347 = vsel %vm136, %v1285, 0
    %1349 = vmatpush.msra.mxu0 0.0
    %1350 = vmatpush.msra.mxu0 0.0
    %1351 = vmatpush.msra.mxu0 0.0
    %1352 = vmatpush.msra.mxu0 0.0
    %1353 = vmatpush.msra.mxu0 0.0
    %1354 = vmatpush.msra.mxu0 0.0
    %1355 = vmatpush.msra.mxu0 0.0
    %1356 = vmatpush.msra.mxu0 0.0
    %1357 = vmatpush.msra.mxu0 0.0
    %1358 = vmatpush.msra.mxu0 0.0
    %1359 = vmatpush.msra.mxu0 0.0
    %1360 = vmatpush.msra.mxu0 0.0
    %1361 = vmatpush.msra.mxu0 0.0
    %1362 = vmatpush.msra.mxu0 0.0
    %1363 = vmatpush.msra.mxu0 0.0
    %1364 = vmatpush.msra.mxu0 %v1344
    %1365 = vmatmul.f32.gmra.mxu0 %v1347
    %v1366 = vpop.f32.mrf.mxu0
    %v1367 = vadd.f32 0.0, %v1366
    %1368 = vdwg.mxu0
    %1369 = vrot.lane.b32.xlu0 %v964, 64
    %v1370 = vpop.permute.xlu0 %1369
    %v1373 = vsel %vm136, %v1286, 0
    %1375 = vmatpush.msra.mxu0 0.0
    %1376 = vmatpush.msra.mxu0 0.0
    %1377 = vmatpush.msra.mxu0 0.0
    %1378 = vmatpush.msra.mxu0 0.0
    %1379 = vmatpush.msra.mxu0 0.0
    %1380 = vmatpush.msra.mxu0 0.0
    %1381 = vmatpush.msra.mxu0 0.0
    %1382 = vmatpush.msra.mxu0 0.0
    %1383 = vmatpush.msra.mxu0 0.0
    %1384 = vmatpush.msra.mxu0 0.0
    %1385 = vmatpush.msra.mxu0 0.0
    %1386 = vmatpush.msra.mxu0 0.0
    %1387 = vmatpush.msra.mxu0 0.0
    %1388 = vmatpush.msra.mxu0 0.0
    %1389 = vmatpush.msra.mxu0 0.0
    %1390 = vmatpush.msra.mxu0 %v1370
    %1391 = vmatmul.f32.gmra.mxu0 %v1373
    %v1392 = vpop.f32.mrf.mxu0
    %v1393 = vadd.f32 0.0, %v1392
    %1394 = vdwg.mxu0
    %1395 = vrot.lane.b32.xlu0 %v968, 64
    %v1396 = vpop.permute.xlu0 %1395
    %v1399 = vsel %vm136, %v1287, 0
    %1401 = vmatpush.msra.mxu0 0.0
    %1402 = vmatpush.msra.mxu0 0.0
    %1403 = vmatpush.msra.mxu0 0.0
    %1404 = vmatpush.msra.mxu0 0.0
    %1405 = vmatpush.msra.mxu0 0.0
    %1406 = vmatpush.msra.mxu0 0.0
    %1407 = vmatpush.msra.mxu0 0.0
    %1408 = vmatpush.msra.mxu0 0.0
    %1409 = vmatpush.msra.mxu0 0.0
    %1410 = vmatpush.msra.mxu0 0.0
    %1411 = vmatpush.msra.mxu0 0.0
    %1412 = vmatpush.msra.mxu0 0.0
    %1413 = vmatpush.msra.mxu0 0.0
    %1414 = vmatpush.msra.mxu0 0.0
    %1415 = vmatpush.msra.mxu0 0.0
    %1416 = vmatpush.msra.mxu0 %v1396
    %1417 = vmatmul.f32.gmra.mxu0 %v1399
    %v1418 = vpop.f32.mrf.mxu0
    %v1419 = vadd.f32 0.0, %v1418
    %1420 = vdwg.mxu0
    %1421 = vrot.lane.b32.xlu0 %v970, 64
    %v1422 = vpop.permute.xlu0 %1421
    %v1425 = vsel %vm136, %v1288, 0
    %1427 = vmatpush.msra.mxu0 0.0
    %1428 = vmatpush.msra.mxu0 0.0
    %1429 = vmatpush.msra.mxu0 0.0
    %1430 = vmatpush.msra.mxu0 0.0
    %1431 = vmatpush.msra.mxu0 0.0
    %1432 = vmatpush.msra.mxu0 0.0
    %1433 = vmatpush.msra.mxu0 0.0
    %1434 = vmatpush.msra.mxu0 0.0
    %1435 = vmatpush.msra.mxu0 0.0
    %1436 = vmatpush.msra.mxu0 0.0
    %1437 = vmatpush.msra.mxu0 0.0
    %1438 = vmatpush.msra.mxu0 0.0
    %1439 = vmatpush.msra.mxu0 0.0
    %1440 = vmatpush.msra.mxu0 0.0
    %1441 = vmatpush.msra.mxu0 0.0
    %1442 = vmatpush.msra.mxu0 %v1422
    %1443 = vmatmul.f32.gmra.mxu0 %v1425
    %v1444 = vpop.f32.mrf.mxu0
    %v1445 = vadd.f32 0.0, %v1444
    %1446 = vdwg.mxu0
    %1447 = vrot.lane.b32.xlu0 %v974, 64
    %v1448 = vpop.permute.xlu0 %1447
    %v1451 = vsel %vm136, %v1289, 0
    %1453 = vmatpush.msra.mxu0 0.0
    %1454 = vmatpush.msra.mxu0 0.0
    %1455 = vmatpush.msra.mxu0 0.0
    %1456 = vmatpush.msra.mxu0 0.0
    %1457 = vmatpush.msra.mxu0 0.0
    %1458 = vmatpush.msra.mxu0 0.0
    %1459 = vmatpush.msra.mxu0 0.0
    %1460 = vmatpush.msra.mxu0 0.0
    %1461 = vmatpush.msra.mxu0 0.0
    %1462 = vmatpush.msra.mxu0 0.0
    %1463 = vmatpush.msra.mxu0 0.0
    %1464 = vmatpush.msra.mxu0 0.0
    %1465 = vmatpush.msra.mxu0 0.0
    %1466 = vmatpush.msra.mxu0 0.0
    %1467 = vmatpush.msra.mxu0 0.0
    %1468 = vmatpush.msra.mxu0 %v1448
    %1469 = vmatmul.f32.gmra.mxu0 %v1451
    %v1470 = vpop.f32.mrf.mxu0
    %v1471 = vadd.f32 0.0, %v1470
    %1472 = vdwg.mxu0
    %1473 = vrot.lane.b32.xlu0 %v976, 64
    %v1474 = vpop.permute.xlu0 %1473
    %v1477 = vsel %vm136, %v1290, 0
    %1479 = vmatpush.msra.mxu0 0.0
    %1480 = vmatpush.msra.mxu0 0.0
    %1481 = vmatpush.msra.mxu0 0.0
    %1482 = vmatpush.msra.mxu0 0.0
    %1483 = vmatpush.msra.mxu0 0.0
    %1484 = vmatpush.msra.mxu0 0.0
    %1485 = vmatpush.msra.mxu0 0.0
    %1486 = vmatpush.msra.mxu0 0.0
    %1487 = vmatpush.msra.mxu0 0.0
    %1488 = vmatpush.msra.mxu0 0.0
    %1489 = vmatpush.msra.mxu0 0.0
    %1490 = vmatpush.msra.mxu0 0.0
    %1491 = vmatpush.msra.mxu0 0.0
    %1492 = vmatpush.msra.mxu0 0.0
    %1493 = vmatpush.msra.mxu0 0.0
    %1494 = vmatpush.msra.mxu0 %v1474
    %1495 = vmatmul.f32.gmra.mxu0 %v1477
    %v1496 = vpop.f32.mrf.mxu0
    %v1497 = vadd.f32 0.0, %v1496
    %1498 = vdwg.mxu0
    %1501 = vrot.lane.b32.xlu0 %v1367, 8
    %v1502 = vpop.permute.xlu0 %1501
    %1503 = vrot.lane.b32.xlu0 %v1393, 8
    %v1504 = vpop.permute.xlu0 %1503
    %1509 = vrot.lane.b32.xlu0 %v1419, 16
    %v1510 = vpop.permute.xlu0 %1509
    %1511 = vrot.lane.b32.xlu0 %v1445, 16
    %v1512 = vpop.permute.xlu0 %1511
    %1517 = vrot.lane.b32.xlu0 %v1471, 24
    %v1518 = vpop.permute.xlu0 %1517
    %1519 = vrot.lane.b32.xlu0 %v1497, 24
    %v1520 = vpop.permute.xlu0 %1519
    %v1523 = vsel %vm136, %v1315, %v1502
    %v1524 = vsel %vm136, %v1341, %v1504
    %v1525 = vsel %vm673, %v1523, %v1510
    %v1526 = vsel %vm673, %v1524, %v1512
    %v1527 = vsel %vm676, %v1525, %v1518
    %v1528 = vsel %vm676, %v1526, %v1520
    %s1529 = scalar_lea.vmem %s5, 32
    %v1530 = vld [vmem:[%s1529] sm:$0xff]
    %v1531 = vld [vmem:[%s1529 + $0x8] sm:$0xff]
    %v1532 = vld [vmem:[%s1529 + $0x10] sm:$0xff]
    %v1533 = vld [vmem:[%s1529 + $0x18] sm:$0xff]
    %s1534 = scalar_lea.vmem %s6, 1
    %v1535 = vld [vmem:[%s1534] sm:$0x1]
    %v1537 = vperm.slane %v1535, 0
    %v1540 = vsel %vm72, %v1527, 0
    %v1543 = vsel %vm72, %v1528, 0
    %1545 = vmatpush.msra.mxu0 0.0
    %1546 = vmatpush.msra.mxu0 0.0
    %1547 = vmatpush.msra.mxu0 0.0
    %1548 = vmatpush.msra.mxu0 0.0
    %1549 = vmatpush.msra.mxu0 0.0
    %1550 = vmatpush.msra.mxu0 0.0
    %1551 = vmatpush.msra.mxu0 0.0
    %1552 = vmatpush.msra.mxu0 0.0
    %1553 = vmatpush.msra.mxu0 0.0
    %1554 = vmatpush.msra.mxu0 0.0
    %1555 = vmatpush.msra.mxu0 0.0
    %1556 = vmatpush.msra.mxu0 0.0
    %1557 = vmatpush.msra.mxu0 %v1533
    %1558 = vmatpush.msra.mxu0 %v1532
    %1559 = vmatpush.msra.mxu0 %v1531
    %1560 = vmatpush.msra.mxu0 %v1530
    %1561 = vmatmul.f32.gmra.mxu0 %v1540
    %v1562 = vpop.f32.mrf.mxu0
    %v1563 = vadd.f32 %v1537, %v1562
    %1564 = vmatmul.f32.gmra.mxu0 %v1543
    %v1565 = vpop.f32.mrf.mxu0
    %v1566 = vadd.f32 %v1537, %v1565
    %1567 = vdwg.mxu0
    %v1568 = vadd.f32 %v918, %v1563
    %v1569 = vadd.f32 %v919, %v1566
    %s1570 = scalar_lea.vmem %s11, 1
    %v1571 = vld [vmem:[%s1570] sm:$0x1]
    %s1572 = scalar_lea.vmem %s12, 1
    %v1573 = vld [vmem:[%s1572] sm:$0x1]
    %v1574 = vsel %vm72, %v1568, 0.0
    %1575 = vadd.xlane.f32.xlu0 %v1574
    %v1576 = vpop.xlane.xlu0 %1575
    %v1577 = vsel %vm72, %v1569, 0.0
    %1578 = vadd.xlane.f32.xlu0 %v1577
    %v1579 = vpop.xlane.xlu0 %1578
    %v1580 = vmul.f32 %v1576, %v732
    %v1581 = vmul.f32 %v1579, %v732
    %v1582 = vsub.f32 %v1568, %v1580
    %v1583 = vsub.f32 %v1569, %v1581
    %v1584 = vmul.f32 %v1582, %v1582
    %v1585 = vmul.f32 %v1583, %v1583
    %v1586 = vsel %vm72, %v1584, 0.0
    %1587 = vadd.xlane.f32.xlu0 %v1586
    %v1588 = vpop.xlane.xlu0 %1587
    %v1589 = vsel %vm72, %v1585, 0.0
    %1590 = vadd.xlane.f32.xlu0 %v1589
    %v1591 = vpop.xlane.xlu0 %1590
    %v1592 = vmul.f32 %v1588, %v732
    %v1593 = vmul.f32 %v1591, %v732
    %v1594 = vadd.f32 %v1592, 1e-05
    %v1595 = vadd.f32 %v1593, 1e-05
    %v1596 = vrsqrt.pop %v1594
    %v1597 = vmul.f32 %v1596, %v1594
    %v1598 = vmul.f32 %v1597, %v1596
    %v1599 = vmul.f32 0.5, %v1598
    %v1600 = vsub.f32 1.5, %v1599
    %v1601 = vmul.f32 %v1596, %v1600
    %vm1602 = vweird.f32 %v1594
    %vm1603 = vweird.f32 %v1596
    %vm1604 = vmor %vm1602, %vm1603
    %v1605 = vsel %vm1604, %v1596, %v1601
    %v1606 = vrsqrt.pop %v1595
    %v1607 = vmul.f32 %v1606, %v1595
    %v1608 = vmul.f32 %v1607, %v1606
    %v1609 = vmul.f32 0.5, %v1608
    %v1610 = vsub.f32 1.5, %v1609
    %v1611 = vmul.f32 %v1606, %v1610
    %vm1612 = vweird.f32 %v1595
    %vm1613 = vweird.f32 %v1606
    %vm1614 = vmor %vm1612, %vm1613
    %v1615 = vsel %vm1614, %v1606, %v1611
    %v1616 = vmul.f32 %v1582, %v1605
    %v1617 = vmul.f32 %v1583, %v1615
    %v1619 = vperm.slane %v1571, 0
    %v1621 = vmul.f32 %v1616, %v1619
    %v1622 = vmul.f32 %v1617, %v1619
    %v1624 = vperm.slane %v1573, 0
    %v1626 = vadd.f32 %v1621, %v1624
    %v1627 = vadd.f32 %v1622, %v1624
    %s1628 = scalar_lea.vmem %s7, 32
    %v1629 = vld [vmem:[%s1628] sm:$0xff]
    %v1630 = vld [vmem:[%s1628 + $0x8] sm:$0xff]
    %v1631 = vld [vmem:[%s1628 + $0x10] sm:$0xff]
    %v1632 = vld [vmem:[%s1628 + $0x18] sm:$0xff]
    %s1633 = scalar_lea.vmem %s8, 1
    %v1634 = vld [vmem:[%s1633] sm:$0x1]
    %v1636 = vperm.slane %v1634, 0
    %v1639 = vsel %vm72, %v1626, 0
    %v1642 = vsel %vm72, %v1627, 0
    %1644 = vmatpush.msra.mxu0 0.0
    %1645 = vmatpush.msra.mxu0 0.0
    %1646 = vmatpush.msra.mxu0 0.0
    %1647 = vmatpush.msra.mxu0 0.0
    %1648 = vmatpush.msra.mxu0 0.0
    %1649 = vmatpush.msra.mxu0 0.0
    %1650 = vmatpush.msra.mxu0 0.0
    %1651 = vmatpush.msra.mxu0 0.0
    %1652 = vmatpush.msra.mxu0 0.0
    %1653 = vmatpush.msra.mxu0 0.0
    %1654 = vmatpush.msra.mxu0 0.0
    %1655 = vmatpush.msra.mxu0 0.0
    %1656 = vmatpush.msra.mxu0 %v1632
    %1657 = vmatpush.msra.mxu0 %v1631
    %1658 = vmatpush.msra.mxu0 %v1630
    %1659 = vmatpush.msra.mxu0 %v1629
    %1660 = vmatmul.f32.gmra.mxu0 %v1639
    %v1661 = vpop.f32.mrf.mxu0
    %v1662 = vadd.f32 %v1636, %v1661
    %1663 = vmatmul.f32.gmra.mxu0 %v1642
    %v1664 = vpop.f32.mrf.mxu0
    %v1665 = vadd.f32 %v1636, %v1664
    %1666 = vdwg.mxu0
    %v1667 = vmax.f32 %v1662, 0.0
    %v1668 = vmax.f32 %v1665, 0.0
    %s1669 = scalar_lea.vmem %s9, 64
    %v1670 = vld [vmem:[%s1669] sm:$0xff]
    %v1671 = vld [vmem:[%s1669 + $0x8] sm:$0xff]
    %v1672 = vld [vmem:[%s1669 + $0x10] sm:$0xff]
    %v1673 = vld [vmem:[%s1669 + $0x18] sm:$0xff]
    %v1674 = vld [vmem:[%s1669 + $0x20] sm:$0xff]
    %v1675 = vld [vmem:[%s1669 + $0x28] sm:$0xff]
    %v1676 = vld [vmem:[%s1669 + $0x30] sm:$0xff]
    %v1677 = vld [vmem:[%s1669 + $0x38] sm:$0xff]
    %s1678 = scalar_lea.vmem %s10, 1
    %v1679 = vld [vmem:[%s1678] sm:$0x1]
    %v1681 = vperm.slane %v1679, 0
    %v1684 = vsel %vm832, %v1667, 0
    %v1687 = vsel %vm832, %v1668, 0
    %1689 = vmatpush.msra.mxu0 0.0
    %1690 = vmatpush.msra.mxu0 0.0
    %1691 = vmatpush.msra.mxu0 0.0
    %1692 = vmatpush.msra.mxu0 0.0
    %1693 = vmatpush.msra.mxu0 0.0
    %1694 = vmatpush.msra.mxu0 0.0
    %1695 = vmatpush.msra.mxu0 0.0
    %1696 = vmatpush.msra.mxu0 0.0
    %1697 = vmatpush.msra.mxu0 %v1677
    %1698 = vmatpush.msra.mxu0 %v1676
    %1699 = vmatpush.msra.mxu0 %v1675
    %1700 = vmatpush.msra.mxu0 %v1674
    %1701 = vmatpush.msra.mxu0 %v1673
    %1702 = vmatpush.msra.mxu0 %v1672
    %1703 = vmatpush.msra.mxu0 %v1671
    %1704 = vmatpush.msra.mxu0 %v1670
    %1705 = vmatmul.f32.gmra.mxu0 %v1684
    %v1706 = vpop.f32.mrf.mxu0
    %v1707 = vadd.f32 %v1681, %v1706
    %1708 = vmatmul.f32.gmra.mxu0 %v1687
    %v1709 = vpop.f32.mrf.mxu0
    %v1710 = vadd.f32 %v1681, %v1709
    %1711 = vdwg.mxu0
    %v1712 = vadd.f32 %v1626, %v1707
    %v1713 = vadd.f32 %v1627, %v1710
    %s1714 = scalar_lea.vmem %s13, 1
    %v1715 = vld [vmem:[%s1714] sm:$0x1]
    %s1716 = scalar_lea.vmem %s14, 1
    %v1717 = vld [vmem:[%s1716] sm:$0x1]
    %v1718 = vsel %vm72, %v1712, 0.0
    %1719 = vadd.xlane.f32.xlu0 %v1718
    %v1720 = vpop.xlane.xlu0 %1719
    %v1721 = vsel %vm72, %v1713, 0.0
    %1722 = vadd.xlane.f32.xlu0 %v1721
    %v1723 = vpop.xlane.xlu0 %1722
    %v1724 = vmul.f32 %v1720, %v732
    %v1725 = vmul.f32 %v1723, %v732
    %v1726 = vsub.f32 %v1712, %v1724
    %v1727 = vsub.f32 %v1713, %v1725
    %v1728 = vmul.f32 %v1726, %v1726
    %v1729 = vmul.f32 %v1727, %v1727
    %v1730 = vsel %vm72, %v1728, 0.0
    %1731 = vadd.xlane.f32.xlu0 %v1730
    %v1732 = vpop.xlane.xlu0 %1731
    %v1733 = vsel %vm72, %v1729, 0.0
    %1734 = vadd.xlane.f32.xlu0 %v1733
    %v1735 = vpop.xlane.xlu0 %1734
    %v1736 = vmul.f32 %v1732, %v732
    %v1737 = vmul.f32 %v1735, %v732
    %v1738 = vadd.f32 %v1736, 1e-05
    %v1739 = vadd.f32 %v1737, 1e-05
    %v1740 = vrsqrt.pop %v1738
    %v1741 = vmul.f32 %v1740, %v1738
    %v1742 = vmul.f32 %v1741, %v1740
    %v1743 = vmul.f32 0.5, %v1742
    %v1744 = vsub.f32 1.5, %v1743
    %v1745 = vmul.f32 %v1740, %v1744
    %vm1746 = vweird.f32 %v1738
    %vm1747 = vweird.f32 %v1740
    %vm1748 = vmor %vm1746, %vm1747
    %v1749 = vsel %vm1748, %v1740, %v1745
    %v1750 = vrsqrt.pop %v1739
    %v1751 = vmul.f32 %v1750, %v1739
    %v1752 = vmul.f32 %v1751, %v1750
    %v1753 = vmul.f32 0.5, %v1752
    %v1754 = vsub.f32 1.5, %v1753
    %v1755 = vmul.f32 %v1750, %v1754
    %vm1756 = vweird.f32 %v1739
    %vm1757 = vweird.f32 %v1750
    %vm1758 = vmor %vm1756, %vm1757
    %v1759 = vsel %vm1758, %v1750, %v1755
    %v1760 = vmul.f32 %v1726, %v1749
    %v1761 = vmul.f32 %v1727, %v1759
    %v1763 = vperm.slane %v1715, 0
    %v1765 = vmul.f32 %v1760, %v1763
    %v1766 = vmul.f32 %v1761, %v1763
    %v1768 = vperm.slane %v1717, 0
    %v1770 = vadd.f32 %v1765, %v1768
    %v1771 = vadd.f32 %v1766, %v1768
    %v1772 = vld [vmem:[%s15] sm:$0x1]
    %v1773 = vld [vmem:[%s16] sm:$0x1]
    %v1774 = vsel %vm72, %v1770, 0.0
    %1775 = vadd.xlane.f32.xlu0 %v1774
    %v1776 = vpop.xlane.xlu0 %1775
    %v1777 = vsel %vm72, %v1771, 0.0
    %1778 = vadd.xlane.f32.xlu0 %v1777
    %v1779 = vpop.xlane.xlu0 %1778
    %v1780 = vmul.f32 %v1776, %v732
    %v1781 = vmul.f32 %v1779, %v732
    %v1782 = vsub.f32 %v1770, %v1780
    %v1783 = vsub.f32 %v1771, %v1781
    %v1784 = vmul.f32 %v1782, %v1782
    %v1785 = vmul.f32 %v1783, %v1783
    %v1786 = vsel %vm72, %v1784, 0.0
    %1787 = vadd.xlane.f32.xlu0 %v1786
    %v1788 = vpop.xlane.xlu0 %1787
    %v1789 = vsel %vm72, %v1785, 0.0
    %1790 = vadd.xlane.f32.xlu0 %v1789
    %v1791 = vpop.xlane.xlu0 %1790
    %v1792 = vmul.f32 %v1788, %v732
    %v1793 = vmul.f32 %v1791, %v732
    %v1794 = vadd.f32 %v1792, 1e-05
    %v1795 = vadd.f32 %v1793, 1e-05
    %v1796 = vrsqrt.pop %v1794
    %v1797 = vmul.f32 %v1796, %v1794
    %v1798 = vmul.f32 %v1797, %v1796
    %v1799 = vmul.f32 0.5, %v1798
    %v1800 = vsub.f32 1.5, %v1799
    %v1801 = vmul.f32 %v1796, %v1800
    %vm1802 = vweird.f32 %v1794
    %vm1803 = vweird.f32 %v1796
    %vm1804 = vmor %vm1802, %vm1803
    %v1805 = vsel %vm1804, %v1796, %v1801
    %v1806 = vrsqrt.pop %v1795
    %v1807 = vmul.f32 %v1806, %v1795
    %v1808 = vmul.f32 %v1807, %v1806
    %v1809 = vmul.f32 0.5, %v1808
    %v1810 = vsub.f32 1.5, %v1809
    %v1811 = vmul.f32 %v1806, %v1810
    %vm1812 = vweird.f32 %v1795
    %vm1813 = vweird.f32 %v1806
    %vm1814 = vmor %vm1812, %vm1813
    %v1815 = vsel %vm1814, %v1806, %v1811
    %v1816 = vmul.f32 %v1782, %v1805
    %v1817 = vmul.f32 %v1783, %v1815
    %v1819 = vperm.slane %v1772, 0
    %v1821 = vmul.f32 %v1816, %v1819
    %v1822 = vmul.f32 %v1817, %v1819
    %v1824 = vperm.slane %v1773, 0
    %v1826 = vadd.f32 %v1821, %v1824
    %v1827 = vadd.f32 %v1822, %v1824
    %v1828 = vld [vmem:[%s2] sm:$0xff]
    %v1829 = vld [vmem:[%s2 + $0x8] sm:$0xff]
    %1831 = vset.pattern.permute.xlu0 0
    %1832 = vperm.xlu0 %1831, %v1828
    %v1833 = vpop.permute.xlu0 %1832
    %1836 = vset.pattern.permute.xlu0 0
    %1837 = vperm.xlu0 %1836, %v1829
    %v1838 = vpop.permute.xlu0 %1837
    %v1840 = vmul.f32 %v1826, %v1833
    %v1841 = vmul.f32 %v1827, %v1838
    %v1842 = vsel %vm72, %v1840, 0.0
    %v1843 = vrot.slane %v1842, 4
    %v1844 = vadd.f32 %v1842, %v1843
    %v1845 = vrot.slane %v1844, 2
    %v1846 = vadd.f32 %v1844, %v1845
    %v1847 = vrot.slane %v1846, 1
    %v1848 = vadd.f32 %v1846, %v1847
    %v1849 = vsel %vm72, %v1841, 0.0
    %v1850 = vrot.slane %v1849, 4
    %v1851 = vadd.f32 %v1849, %v1850
    %v1852 = vrot.slane %v1851, 2
    %v1853 = vadd.f32 %v1851, %v1852
    %v1854 = vrot.slane %v1853, 1
    %v1855 = vadd.f32 %v1853, %v1854
    %vm1856 = vcmask 58368
    %v1857 = vsel %vm1856, %v59, 0.0
    %1858 = vadd.xlane.f32.xlu0 %v1857
    %v1859 = vpop.xlane.xlu0 %1858
    %v1860 = vmax.f32 %v1859, 1.0
    %v1862 = vrot.slane %v1860, 1
    %v1865 = vrcp.pop %v1860
    %v1866 = vmul.f32 %v1860, %v1865
    %v1867 = vsub.f32 1.0, %v1866
    %v1868 = vmul.f32 %v1865, %v1867
    %v1869 = vadd.f32 %v1865, %v1868
    %vm1870 = vweird.f32 %v1860
    %vm1871 = vweird.f32 %v1865
    %vm1872 = vmor %vm1870, %vm1871
    %v1873 = vsel %vm1872, %v1865, %v1869
    %v1874 = vand.u32 2147483647, %v1860
    %vm1875 = vcmp.eq.f32.partialorder %v1874, 8.507059e+37
    %v1876 = vand.u32 %v1860, 2147483648
    %v1877 = vor.u32 1.1754944e-38, %v1876
    %v1878 = vsel %vm1875, %v1877, %v1873
    %v1879 = vmul.f32 %v1848, %v1878
    %v1880 = vrcp.pop %v1862
    %v1881 = vmul.f32 %v1862, %v1880
    %v1882 = vsub.f32 1.0, %v1881
    %v1883 = vmul.f32 %v1880, %v1882
    %v1884 = vadd.f32 %v1880, %v1883
    %vm1885 = vweird.f32 %v1862
    %vm1886 = vweird.f32 %v1880
    %vm1887 = vmor %vm1885, %vm1886
    %v1888 = vsel %vm1887, %v1880, %v1884
    %v1889 = vand.u32 2147483647, %v1862
    %vm1890 = vcmp.eq.f32.partialorder %v1889, 8.507059e+37
    %v1891 = vand.u32 %v1862, 2147483648
    %v1892 = vor.u32 1.1754944e-38, %v1891
    %v1893 = vsel %vm1890, %v1892, %v1888
    %v1894 = vmul.f32 %v1855, %v1893
    %v1897 = vrot.slane %v1894, 7
    %vm1898 = vcmask 1041409
    %v1899 = vsel %vm1898, %v1897, %v1879
    %vm1901 = vcmask 254976
    %1902 = vst.msk [vmem:[#allocation2] sm:$0x3] %vm1901, %v1899
    // Predicated region
    $region70: #{encoder_forward.1} parent=1 // pred_check
      _
    $region71: #{encoder_forward.1} parent=1 // pred_check_branch
      %1904 = sbr.rel (0) target = $region73
    $region72: #{encoder_forward.1} parent=1 // pred_region
      %1906 = vsyncadd [#allocation3], 0
      %s1908 = sshll.u32 [#allocation2], 4
      %s1909 = int_to_ptr.vmem [resolvable:$true] %s1908
      %s1910 = sshll.u32 %s17, 4
      %s1911 = int_to_ptr.hbm [resolvable:$true] %s1910
      %1913 = dma.vmem_to_hbm [thread:$0]  %s1909, 32, %s1911, [#allocation3]
    $region73: #{encoder_forward.1} parent=1 // pred_fallthru
      _
    // Predicated region
    $region74: #{encoder_forward.1} parent=1 // pred_check
      _
    $region75: #{encoder_forward.1} parent=1 // pred_check_branch
      %1915 = sbr.rel (0) target = $region77
    $region76: #{encoder_forward.1} parent=1 // pred_region
      %1917 = dma.done [#allocation3], 32
    $region77: #{encoder_forward.1} parent=1 // pred_fallthru
      _
    %1918 = vsyncpa [#allocation3], 1

</llo_original>
